<compile_context>
chip_gen: v7x
topology: tpu7x:2x2x1
jax: 0.10.0
libtpu: 0.0.40
codegen_flags: <defaults>
</compile_context>

<pallas_src>
import jax
import jax.numpy as jnp
from jax import lax
from jax.experimental import pallas as pl
from jax.experimental.pallas import tpu as pltpu

DILATIONS = (1, 2, 4)
LN_EPS = 1e-5
LEAKY_SLOPE = 0.2


def _make_kernel(use_seg):
    """use_seg=True -> LayerNorm stats via block-diagonal averaging matmul
    (needed when several batch elements share the lane axis)."""

    def kernel(inp_ref, mw_ref, cw_ref, cb_ref, lnm_ref, hw_ref, *rest):
        if use_seg:
            p_ref, out_ref = rest
        else:
            (out_ref,) = rest

        H = cw_ref.shape[1]
        NH2 = hw_ref.shape[0]
        NH = NH2 - 2
        L = inp_ref.shape[-1]

        inp = inp_ref[0]          # (3, L)  packed [f0; loudness; periodicity]
        mw = mw_ref[...]          # (H, 4)  proj-folded merge: 3 weight cols + bias col

        # merge conv with the three 1x1 input projections algebraically folded in.
        x = (mw[:, 0:1] * inp[0:1, :]
             + mw[:, 1:2] * inp[1:2, :]
             + mw[:, 2:3] * inp[2:3, :]
             + mw[:, 3:4])                                            # (H, L)

        if use_seg:
            P = p_ref[...]        # (L, L) block-diagonal averaging matrix (1/T)

        for blk, d in enumerate(DILATIONS):
            lnm = lnm_ref[blk]                                        # (4, L)
            gamma, beta = lnm[0:1, :], lnm[1:2, :]
            mask_l, mask_r = lnm[2:3, :], lnm[3:4, :]

            # Dilated k=3 conv: shifted copies (zero padded per time segment).
            zeros_d = jnp.zeros((H, d), dtype=x.dtype)
            x_left = jnp.concatenate([zeros_d, x[:, :L - d]], axis=1) * mask_l
            x_right = jnp.concatenate([x[:, d:], zeros_d], axis=1) * mask_r

            # Fuse all 3 taps into one matmul: (H,3H) @ (3H,L).
            stacked = jnp.concatenate([x_left, x, x_right], axis=0)   # (3H, L)
            z = jnp.dot(cw_ref[blk], stacked,
                        preferred_element_type=jnp.float32) + cb_ref[blk]  # (H, L)

            # LayerNorm over time (biased variance, eps=1e-5).
            if use_seg:
                mean = jnp.dot(z, P, preferred_element_type=jnp.float32)
                zc = z - mean
                var = jnp.dot(zc * zc, P, preferred_element_type=jnp.float32)
            else:
                mean = jnp.mean(z, axis=1, keepdims=True)
                zc = z - mean
                var = jnp.mean(zc * zc, axis=1, keepdims=True)

            y = zc * lax.rsqrt(var + LN_EPS)
            y = y * gamma + beta
            y = jnp.where(y > 0, y, LEAKY_SLOPE * y)                  # LeakyReLU(0.2)
            # TODO(synk): nn.Dropout(0.1) is the identity here (eval-mode forward).
            x = x + y

        # All three output heads fused into one matmul; per-row activation select.
        hw = hw_ref[...]                                              # (NH+2, H+1)
        heads = jnp.dot(hw[:, :H], x,
                        preferred_element_type=jnp.float32) + hw[:, H:H + 1]
        sp = jnp.where(heads > 20.0, heads,                           # Softplus (thr=20)
                       jnp.log1p(jnp.exp(jnp.minimum(heads, 20.0))))
        sg = jax.nn.sigmoid(heads)
        th = jnp.tanh(heads)
        row = lax.broadcasted_iota(jnp.int32, heads.shape, 0)
        out_ref[0] = jnp.where(row < NH, sp, jnp.where(row == NH, sg, th))

    return kernel


def acoustic_encoder(f0, loudness, periodicity, params):
    B, _, T = f0.shape
    H = params["merge_w"].shape[0]
    NH = params["harm_w"].shape[0]
    H3 = H // 3
    nblk = len(DILATIONS)
    f32 = jnp.float32

    # At most 2 grid steps: amortizes per-step overhead / DMA count over the
    # batch while keeping a "parallel" batch-block axis for v7x's 2 TensorCores.
    G = 2 if (B >= 2 and B % 2 == 0) else 1
    BB = B // G
    L = BB * T
    use_seg = BB > 1

    # ---- pack inputs: three (B,1,T) -> one (G, 3, BB*T); lane index = bb*T + t.
    inp = jnp.concatenate([f0, loudness, periodicity], axis=1).astype(f32)   # (B,3,T)
    inp = inp.reshape(G, BB, 3, T).transpose(0, 2, 1, 3).reshape(G, 3, L)

    # ---- fold the three 1x1 input projections into merge (pure algebra, once).
    pw = params["proj_w"][:, 0]                                   # (H,)
    scaled = params["merge_w"] * pw[None, :]                      # (H, H)
    mcols = jnp.stack(
        [scaled[:, i * H3:(i + 1) * H3].sum(axis=1) for i in range(3)], axis=1)  # (H,3)
    mbias = params["merge_w"] @ params["proj_b"] + params["merge_b"]             # (H,1)
    mw = jnp.concatenate([mcols, mbias], axis=1).astype(f32)                     # (H,4)

    # ---- fuse the 3 dilated-conv taps into one (H, 3H) matrix per block.
    cw = jnp.concatenate([params["conv_w"][:, t] for t in range(3)],
                         axis=2).astype(f32)                                     # (3,H,3H)
    cb = params["conv_b"].astype(f32)                                            # (3,H,1)

    # ---- LayerNorm affine (tiled over the batch block) + shift-validity masks.
    ln_g = jnp.tile(params["ln_g"], (1, 1, BB)).astype(f32)                      # (3,1,L)
    ln_b = jnp.tile(params["ln_b"], (1, 1, BB)).astype(f32)
    tpos = jnp.tile(jnp.arange(T, dtype=f32)[None, None, :], (nblk, 1, BB))      # (3,1,L)
    dvec = jnp.asarray(DILATIONS, f32).reshape(nblk, 1, 1)
    mask_l = (tpos >= dvec).astype(f32)
    mask_r = (tpos < (T - dvec)).astype(f32)
    lnm = jnp.concatenate([ln_g, ln_b, mask_l, mask_r], axis=1)                  # (3,4,L)

    # ---- fuse the three output heads into one (NH+2, H+1) weight+bias slab.
    hw = jnp.concatenate([
        jnp.concatenate([params["harm_w"], params["harm_b"]], axis=1),
        jnp.concatenate([params["noise_w"], params["noise_b"]], axis=1),
        jnp.concatenate([params["phase_w"], params["phase_b"]], axis=1)],
        axis=0).astype(f32)                                                      # (NH+2,H+1)

    inputs = [inp, mw, cw, cb, lnm, hw]
    if use_seg:
        seg = jnp.repeat(jnp.arange(BB), T)
        P = ((seg[:, None] == seg[None, :]).astype(f32) / T)                     # (L,L)
        inputs.append(P)

    def full_spec(arr):
        nd = arr.ndim
        return pl.BlockSpec(arr.shape, lambda g, _nd=nd: (0,) * _nd)

    in_specs = ([pl.BlockSpec((1, 3, L), lambda g: (g, 0, 0))]
                + [full_spec(a) for a in inputs[1:]])
    out_specs = pl.BlockSpec((1, NH + 2, L), lambda g: (g, 0, 0))
    out_shape = jax.ShapeDtypeStruct((G, NH + 2, L), f32)

    out = pl.pallas_call(
        _make_kernel(use_seg),
        out_shape=out_shape,
        grid_spec=pltpu.PrefetchScalarGridSpec(
            num_scalar_prefetch=0,
            grid=(G,),
            in_specs=in_specs,
            out_specs=out_specs),
        compiler_params=pltpu.CompilerParams(
            dimension_semantics=("parallel",)),
    )(*inputs)

    # Unpack the single dense output and split heads (tiny wrapper-side ops).
    out = out.reshape(G, NH + 2, BB, T).transpose(0, 2, 1, 3).reshape(B, NH + 2, T)
    return out[:, :NH], out[:, NH:NH + 1], out[:, NH + 1:NH + 2]


def init_params(key, hidden_dim=48, n_harmonics=16, T=48):
    assert hidden_dim % 3 == 0
    assert T == hidden_dim  # required by nn.LayerNorm([hidden_dim]) on [B, C, T]
    H, NH = hidden_dim, n_harmonics
    ks = jax.random.split(key, 14)

    def w(k, shape, scale):
        return (scale * jax.random.normal(k, shape)).astype(jnp.float32)

    return {
        "proj_w": w(ks[0], (H, 1), 0.5),     # stacked f0/loudness/periodicity 1x1 weights
        "proj_b": w(ks[1], (H, 1), 0.1),
        "merge_w": w(ks[2], (H, H), 0.15),
        "merge_b": w(ks[3], (H, 1), 0.1),
        "conv_w": w(ks[4], (3, 3, H, H), 0.08),   # [block, tap, out_ch, in_ch]
        "conv_b": w(ks[5], (3, H, 1), 0.1),
        "ln_g": (1.0 + 0.1 * jax.random.normal(ks[6], (3, 1, T))).astype(jnp.float32),
        "ln_b": w(ks[7], (3, 1, T), 0.1),
        "harm_w": w(ks[8], (NH, H), 0.1),
        "harm_b": w(ks[9], (NH, 1), 0.1),
        "noise_w": w(ks[10], (1, H), 0.1),
        "noise_b": w(ks[11], (1, 1), 0.1),
        "phase_w": w(ks[12], (1, H), 0.1),
        "phase_b": w(ks[13], (1, 1), 0.1),
    }


def reference_forward(f0, loud, per, p):
    """Pure-JAX reference mirroring the PyTorch forward (eval mode)."""
    prec = lax.Precision.HIGHEST
    B, _, T = f0.shape
    H = p["merge_w"].shape[0]
    H3 = H // 3

    def mm(w, x):  # (O,C) x (B,C,T) -> (B,O,T)
        return jnp.einsum("oc,bct->bot", w, x, precision=prec)

    stacked = jnp.concatenate([jnp.broadcast_to(f0, (B, H3, T)),
                               jnp.broadcast_to(loud, (B, H3, T)),
                               jnp.broadcast_to(per, (B, H3, T))], axis=1)
    x0 = stacked * p["proj_w"][None] + p["proj_b"][None]
    x = mm(p["merge_w"], x0) + p["merge_b"][None]
    for blk, d in enumerate(DILATIONS):
        xp = jnp.pad(x, ((0, 0), (0, 0), (d, d)))
        z = (mm(p["conv_w"][blk, 0], xp[:, :, :T])
             + mm(p["conv_w"][blk, 1], xp[:, :, d:d + T])
             + mm(p["conv_w"][blk, 2], xp[:, :, 2 * d:2 * d + T])
             + p["conv_b"][blk][None])
        mean = z.mean(-1, keepdims=True)
        var = ((z - mean) ** 2).mean(-1, keepdims=True)
        y = (z - mean) / jnp.sqrt(var + LN_EPS)
        y = y * p["ln_g"][blk][None] + p["ln_b"][blk][None]
        y = jnp.where(y > 0, y, LEAKY_SLOPE * y)
        x = x + y
    harm = jax.nn.softplus(mm(p["harm_w"], x) + p["harm_b"][None])
    noise = jax.nn.sigmoid(mm(p["noise_w"], x) + p["noise_b"][None])
    phase = jnp.tanh(mm(p["phase_w"], x) + p["phase_b"][None])
    return harm, noise, phase


if __name__ == "__main__":
    B, H, NH, T = 2, 48, 16, 48
    key = jax.random.PRNGKey(0)
    kp, kf, kl, kq = jax.random.split(key, 4)
    params = init_params(kp, hidden_dim=H, n_harmonics=NH, T=T)

    f0 = ((100.0 + 50.0 * jax.random.uniform(kf, (B, 1, T))) / 100.0).astype(jnp.float32)
    loudness = jax.random.normal(kl, (B, 1, T), jnp.float32)
    periodicity = jax.random.uniform(kq, (B, 1, T), dtype=jnp.float32)

    harm, noise, phase = jax.block_until_ready(
        acoustic_encoder(f0, loudness, periodicity, params))

    assert harm.shape == (B, NH, T)
    assert noise.shape == (B, 1, T)
    assert phase.shape == (B, 1, T)

    rh, rn, rp = reference_forward(f0, loudness, periodicity, params)
    for got, ref in ((harm, rh), (noise, rn), (phase, rp)):
        assert bool(jnp.all(jnp.isfinite(got)))
        assert bool(jnp.allclose(got, ref, rtol=2e-2, atol=2e-2))

    print("KERNEL_OK")
</pallas_src>

<mosaic_0001>
module attributes {stable_mosaic.version = 11 : i64} {
  func.func @kernel(%arg0: i32, %arg1: memref<1x3x48xf32, #tpu.memory_space<vmem>>, %arg2: memref<48x4xf32, #tpu.memory_space<vmem>>, %arg3: memref<3x48x144xf32, #tpu.memory_space<vmem>>, %arg4: memref<3x48x1xf32, #tpu.memory_space<vmem>>, %arg5: memref<3x4x48xf32, #tpu.memory_space<vmem>>, %arg6: memref<18x49xf32, #tpu.memory_space<vmem>>, %arg7: memref<1x18x48xf32, #tpu.memory_space<vmem>>) attributes {dimension_semantics = [#tpu.dimension_semantics<parallel>], iteration_bounds = array<i64: 2>, scalar_prefetch = 0 : i64, scratch_operands = 0 : i64, tpu.core_type = #tpu.core_type<tc>, window_params = [{transform_indices = @transform_0, window_bounds = array<i64: 1, 3, 48>}, {pipeline_mode = #tpu.pipeline_mode<synchronous>, transform_indices = @transform_1, window_bounds = array<i64: 48, 4>}, {pipeline_mode = #tpu.pipeline_mode<synchronous>, transform_indices = @transform_2, window_bounds = array<i64: 3, 48, 144>}, {pipeline_mode = #tpu.pipeline_mode<synchronous>, transform_indices = @transform_3, window_bounds = array<i64: 3, 48, 1>}, {pipeline_mode = #tpu.pipeline_mode<synchronous>, transform_indices = @transform_4, window_bounds = array<i64: 3, 4, 48>}, {pipeline_mode = #tpu.pipeline_mode<synchronous>, transform_indices = @transform_5, window_bounds = array<i64: 18, 49>}, {transform_indices = @transform_6, window_bounds = array<i64: 1, 18, 48>}]} {
    %c0 = arith.constant 0 : index
    %c0_0 = arith.constant 0 : index
    %c0_1 = arith.constant 0 : index
    %0 = vector.load %arg1[%c0, %c0_0, %c0_1] : memref<1x3x48xf32, #tpu.memory_space<vmem>>, vector<1x3x48xf32>
    %1 = vector.shape_cast %0 : vector<1x3x48xf32> to vector<3x48xf32>
    %c0_2 = arith.constant 0 : index
    %c0_3 = arith.constant 0 : index
    %2 = vector.load %arg2[%c0_2, %c0_3] : memref<48x4xf32, #tpu.memory_space<vmem>>, vector<48x4xf32>
    %3 = vector.extract_strided_slice %2 {offsets = [0, 0], sizes = [48, 1], strides = [1, 1]} : vector<48x4xf32> to vector<48x1xf32>
    %4 = vector.extract_strided_slice %1 {offsets = [0, 0], sizes = [1, 48], strides = [1, 1]} : vector<3x48xf32> to vector<1x48xf32>
    %5 = vector.broadcast %3 : vector<48x1xf32> to vector<48x48xf32>
    %6 = vector.broadcast %4 : vector<1x48xf32> to vector<48x48xf32>
    %7 = arith.mulf %5, %6 : vector<48x48xf32>
    %8 = vector.extract_strided_slice %2 {offsets = [0, 1], sizes = [48, 1], strides = [1, 1]} : vector<48x4xf32> to vector<48x1xf32>
    %9 = vector.extract_strided_slice %1 {offsets = [1, 0], sizes = [1, 48], strides = [1, 1]} : vector<3x48xf32> to vector<1x48xf32>
    %10 = vector.broadcast %8 : vector<48x1xf32> to vector<48x48xf32>
    %11 = vector.broadcast %9 : vector<1x48xf32> to vector<48x48xf32>
    %12 = arith.mulf %10, %11 : vector<48x48xf32>
    %13 = arith.addf %7, %12 : vector<48x48xf32>
    %14 = vector.extract_strided_slice %2 {offsets = [0, 2], sizes = [48, 1], strides = [1, 1]} : vector<48x4xf32> to vector<48x1xf32>
    %15 = vector.extract_strided_slice %1 {offsets = [2, 0], sizes = [1, 48], strides = [1, 1]} : vector<3x48xf32> to vector<1x48xf32>
    %16 = vector.broadcast %14 : vector<48x1xf32> to vector<48x48xf32>
    %17 = vector.broadcast %15 : vector<1x48xf32> to vector<48x48xf32>
    %18 = arith.mulf %16, %17 : vector<48x48xf32>
    %19 = arith.addf %13, %18 : vector<48x48xf32>
    %20 = vector.extract_strided_slice %2 {offsets = [0, 3], sizes = [48, 1], strides = [1, 1]} : vector<48x4xf32> to vector<48x1xf32>
    %21 = vector.broadcast %20 : vector<48x1xf32> to vector<48x48xf32>
    %22 = arith.addf %19, %21 : vector<48x48xf32>
    %c0_4 = arith.constant 0 : index
    %c0_5 = arith.constant 0 : index
    %c0_6 = arith.constant 0 : index
    %23 = vector.load %arg5[%c0_4, %c0_5, %c0_6] : memref<3x4x48xf32, #tpu.memory_space<vmem>>, vector<1x4x48xf32>
    %24 = vector.shape_cast %23 : vector<1x4x48xf32> to vector<4x48xf32>
    %25 = vector.extract_strided_slice %24 {offsets = [0, 0], sizes = [1, 48], strides = [1, 1]} : vector<4x48xf32> to vector<1x48xf32>
    %26 = vector.extract_strided_slice %24 {offsets = [1, 0], sizes = [1, 48], strides = [1, 1]} : vector<4x48xf32> to vector<1x48xf32>
    %27 = vector.extract_strided_slice %24 {offsets = [2, 0], sizes = [1, 48], strides = [1, 1]} : vector<4x48xf32> to vector<1x48xf32>
    %28 = vector.extract_strided_slice %24 {offsets = [3, 0], sizes = [1, 48], strides = [1, 1]} : vector<4x48xf32> to vector<1x48xf32>
    %cst = arith.constant 0.000000e+00 : f32
    %29 = vector.broadcast %cst : f32 to vector<48x1xf32>
    %30 = vector.extract_strided_slice %22 {offsets = [0, 0], sizes = [48, 47], strides = [1, 1]} : vector<48x48xf32> to vector<48x47xf32>
    %31 = tpu.concatenate %29, %30 in 1 : vector<48x1xf32>, vector<48x47xf32> -> vector<48x48xf32>
    %32 = vector.broadcast %27 : vector<1x48xf32> to vector<48x48xf32>
    %33 = arith.mulf %31, %32 : vector<48x48xf32>
    %34 = vector.extract_strided_slice %22 {offsets = [0, 1], sizes = [48, 47], strides = [1, 1]} : vector<48x48xf32> to vector<48x47xf32>
    %35 = tpu.concatenate %34, %29 in 1 : vector<48x47xf32>, vector<48x1xf32> -> vector<48x48xf32>
    %36 = vector.broadcast %28 : vector<1x48xf32> to vector<48x48xf32>
    %37 = arith.mulf %35, %36 : vector<48x48xf32>
    %38 = tpu.concatenate %33, %22, %37 in 0 : vector<48x48xf32>, vector<48x48xf32>, vector<48x48xf32> -> vector<144x48xf32>
    %c0_7 = arith.constant 0 : index
    %c0_8 = arith.constant 0 : index
    %c0_9 = arith.constant 0 : index
    %39 = vector.load %arg3[%c0_7, %c0_8, %c0_9] : memref<3x48x144xf32, #tpu.memory_space<vmem>>, vector<1x48x144xf32>
    %40 = vector.shape_cast %39 : vector<1x48x144xf32> to vector<48x144xf32>
    %cst_10 = arith.constant dense<0.000000e+00> : vector<48x48xf32>
    %41 = tpu.matmul %40, %38, %cst_10 {dimension_numbers = #tpu.dot_dimension_numbers<[1], [0], [0], [1], [0, 0, 1, 1], [], []>} : vector<48x144xf32>, vector<144x48xf32>, vector<48x48xf32> -> vector<48x48xf32>
    %c0_11 = arith.constant 0 : index
    %c0_12 = arith.constant 0 : index
    %c0_13 = arith.constant 0 : index
    %42 = vector.load %arg4[%c0_11, %c0_12, %c0_13] : memref<3x48x1xf32, #tpu.memory_space<vmem>>, vector<1x48x1xf32>
    %43 = vector.shape_cast %42 : vector<1x48x1xf32> to vector<48x1xf32>
    %44 = vector.broadcast %43 : vector<48x1xf32> to vector<48x48xf32>
    %45 = arith.addf %41, %44 : vector<48x48xf32>
    %cst_14 = arith.constant dense<0.000000e+00> : vector<48xf32>
    %46 = vector.multi_reduction <add>, %45, %cst_14 [1] : vector<48x48xf32> to vector<48xf32>
    %47 = vector.shape_cast %46 : vector<48xf32> to vector<48x1xf32>
    %cst_15 = arith.constant 4.800000e+01 : f32
    %48 = vector.broadcast %cst_15 : f32 to vector<48x1xf32>
    %49 = arith.divf %47, %48 : vector<48x1xf32>
    %50 = vector.broadcast %49 : vector<48x1xf32> to vector<48x48xf32>
    %51 = arith.subf %45, %50 : vector<48x48xf32>
    %52 = arith.mulf %51, %51 : vector<48x48xf32>
    %cst_16 = arith.constant dense<0.000000e+00> : vector<48xf32>
    %53 = vector.multi_reduction <add>, %52, %cst_16 [1] : vector<48x48xf32> to vector<48xf32>
    %54 = vector.shape_cast %53 : vector<48xf32> to vector<48x1xf32>
    %cst_17 = arith.constant 4.800000e+01 : f32
    %55 = vector.broadcast %cst_17 : f32 to vector<48x1xf32>
    %56 = arith.divf %54, %55 : vector<48x1xf32>
    %cst_18 = arith.constant 9.99999974E-6 : f32
    %57 = vector.broadcast %cst_18 : f32 to vector<48x1xf32>
    %58 = arith.addf %56, %57 : vector<48x1xf32>
    %59 = math.rsqrt %58 : vector<48x1xf32>
    %60 = vector.broadcast %59 : vector<48x1xf32> to vector<48x48xf32>
    %61 = arith.mulf %51, %60 : vector<48x48xf32>
    %62 = vector.broadcast %25 : vector<1x48xf32> to vector<48x48xf32>
    %63 = arith.mulf %61, %62 : vector<48x48xf32>
    %64 = vector.broadcast %26 : vector<1x48xf32> to vector<48x48xf32>
    %65 = arith.addf %63, %64 : vector<48x48xf32>
    %cst_19 = arith.constant 0.000000e+00 : f32
    %66 = vector.broadcast %cst_19 : f32 to vector<48x48xf32>
    %67 = arith.cmpf ogt, %65, %66 : vector<48x48xf32>
    %cst_20 = arith.constant 2.000000e-01 : f32
    %68 = vector.broadcast %cst_20 : f32 to vector<48x48xf32>
    %69 = arith.mulf %68, %65 : vector<48x48xf32>
    %70 = arith.select %67, %65, %69 : vector<48x48xi1>, vector<48x48xf32>
    %71 = arith.addf %22, %70 : vector<48x48xf32>
    %c1 = arith.constant 1 : index
    %c0_21 = arith.constant 0 : index
    %c0_22 = arith.constant 0 : index
    %72 = vector.load %arg5[%c1, %c0_21, %c0_22] : memref<3x4x48xf32, #tpu.memory_space<vmem>>, vector<1x4x48xf32>
    %73 = vector.shape_cast %72 : vector<1x4x48xf32> to vector<4x48xf32>
    %74 = vector.extract_strided_slice %73 {offsets = [0, 0], sizes = [1, 48], strides = [1, 1]} : vector<4x48xf32> to vector<1x48xf32>
    %75 = vector.extract_strided_slice %73 {offsets = [1, 0], sizes = [1, 48], strides = [1, 1]} : vector<4x48xf32> to vector<1x48xf32>
    %76 = vector.extract_strided_slice %73 {offsets = [2, 0], sizes = [1, 48], strides = [1, 1]} : vector<4x48xf32> to vector<1x48xf32>
    %77 = vector.extract_strided_slice %73 {offsets = [3, 0], sizes = [1, 48], strides = [1, 1]} : vector<4x48xf32> to vector<1x48xf32>
    %cst_23 = arith.constant 0.000000e+00 : f32
    %78 = vector.broadcast %cst_23 : f32 to vector<48x2xf32>
    %79 = vector.extract_strided_slice %71 {offsets = [0, 0], sizes = [48, 46], strides = [1, 1]} : vector<48x48xf32> to vector<48x46xf32>
    %80 = tpu.concatenate %78, %79 in 1 : vector<48x2xf32>, vector<48x46xf32> -> vector<48x48xf32>
    %81 = vector.broadcast %76 : vector<1x48xf32> to vector<48x48xf32>
    %82 = arith.mulf %80, %81 : vector<48x48xf32>
    %83 = vector.extract_strided_slice %71 {offsets = [0, 2], sizes = [48, 46], strides = [1, 1]} : vector<48x48xf32> to vector<48x46xf32>
    %84 = tpu.concatenate %83, %78 in 1 : vector<48x46xf32>, vector<48x2xf32> -> vector<48x48xf32>
    %85 = vector.broadcast %77 : vector<1x48xf32> to vector<48x48xf32>
    %86 = arith.mulf %84, %85 : vector<48x48xf32>
    %87 = tpu.concatenate %82, %71, %86 in 0 : vector<48x48xf32>, vector<48x48xf32>, vector<48x48xf32> -> vector<144x48xf32>
    %c1_24 = arith.constant 1 : index
    %c0_25 = arith.constant 0 : index
    %c0_26 = arith.constant 0 : index
    %88 = vector.load %arg3[%c1_24, %c0_25, %c0_26] : memref<3x48x144xf32, #tpu.memory_space<vmem>>, vector<1x48x144xf32>
    %89 = vector.shape_cast %88 : vector<1x48x144xf32> to vector<48x144xf32>
    %cst_27 = arith.constant dense<0.000000e+00> : vector<48x48xf32>
    %90 = tpu.matmul %89, %87, %cst_27 {dimension_numbers = #tpu.dot_dimension_numbers<[1], [0], [0], [1], [0, 0, 1, 1], [], []>} : vector<48x144xf32>, vector<144x48xf32>, vector<48x48xf32> -> vector<48x48xf32>
    %c1_28 = arith.constant 1 : index
    %c0_29 = arith.constant 0 : index
    %c0_30 = arith.constant 0 : index
    %91 = vector.load %arg4[%c1_28, %c0_29, %c0_30] : memref<3x48x1xf32, #tpu.memory_space<vmem>>, vector<1x48x1xf32>
    %92 = vector.shape_cast %91 : vector<1x48x1xf32> to vector<48x1xf32>
    %93 = vector.broadcast %92 : vector<48x1xf32> to vector<48x48xf32>
    %94 = arith.addf %90, %93 : vector<48x48xf32>
    %cst_31 = arith.constant dense<0.000000e+00> : vector<48xf32>
    %95 = vector.multi_reduction <add>, %94, %cst_31 [1] : vector<48x48xf32> to vector<48xf32>
    %96 = vector.shape_cast %95 : vector<48xf32> to vector<48x1xf32>
    %cst_32 = arith.constant 4.800000e+01 : f32
    %97 = vector.broadcast %cst_32 : f32 to vector<48x1xf32>
    %98 = arith.divf %96, %97 : vector<48x1xf32>
    %99 = vector.broadcast %98 : vector<48x1xf32> to vector<48x48xf32>
    %100 = arith.subf %94, %99 : vector<48x48xf32>
    %101 = arith.mulf %100, %100 : vector<48x48xf32>
    %cst_33 = arith.constant dense<0.000000e+00> : vector<48xf32>
    %102 = vector.multi_reduction <add>, %101, %cst_33 [1] : vector<48x48xf32> to vector<48xf32>
    %103 = vector.shape_cast %102 : vector<48xf32> to vector<48x1xf32>
    %cst_34 = arith.constant 4.800000e+01 : f32
    %104 = vector.broadcast %cst_34 : f32 to vector<48x1xf32>
    %105 = arith.divf %103, %104 : vector<48x1xf32>
    %cst_35 = arith.constant 9.99999974E-6 : f32
    %106 = vector.broadcast %cst_35 : f32 to vector<48x1xf32>
    %107 = arith.addf %105, %106 : vector<48x1xf32>
    %108 = math.rsqrt %107 : vector<48x1xf32>
    %109 = vector.broadcast %108 : vector<48x1xf32> to vector<48x48xf32>
    %110 = arith.mulf %100, %109 : vector<48x48xf32>
    %111 = vector.broadcast %74 : vector<1x48xf32> to vector<48x48xf32>
    %112 = arith.mulf %110, %111 : vector<48x48xf32>
    %113 = vector.broadcast %75 : vector<1x48xf32> to vector<48x48xf32>
    %114 = arith.addf %112, %113 : vector<48x48xf32>
    %cst_36 = arith.constant 0.000000e+00 : f32
    %115 = vector.broadcast %cst_36 : f32 to vector<48x48xf32>
    %116 = arith.cmpf ogt, %114, %115 : vector<48x48xf32>
    %cst_37 = arith.constant 2.000000e-01 : f32
    %117 = vector.broadcast %cst_37 : f32 to vector<48x48xf32>
    %118 = arith.mulf %117, %114 : vector<48x48xf32>
    %119 = arith.select %116, %114, %118 : vector<48x48xi1>, vector<48x48xf32>
    %120 = arith.addf %71, %119 : vector<48x48xf32>
    %c2 = arith.constant 2 : index
    %c0_38 = arith.constant 0 : index
    %c0_39 = arith.constant 0 : index
    %121 = vector.load %arg5[%c2, %c0_38, %c0_39] : memref<3x4x48xf32, #tpu.memory_space<vmem>>, vector<1x4x48xf32>
    %122 = vector.shape_cast %121 : vector<1x4x48xf32> to vector<4x48xf32>
    %123 = vector.extract_strided_slice %122 {offsets = [0, 0], sizes = [1, 48], strides = [1, 1]} : vector<4x48xf32> to vector<1x48xf32>
    %124 = vector.extract_strided_slice %122 {offsets = [1, 0], sizes = [1, 48], strides = [1, 1]} : vector<4x48xf32> to vector<1x48xf32>
    %125 = vector.extract_strided_slice %122 {offsets = [2, 0], sizes = [1, 48], strides = [1, 1]} : vector<4x48xf32> to vector<1x48xf32>
    %126 = vector.extract_strided_slice %122 {offsets = [3, 0], sizes = [1, 48], strides = [1, 1]} : vector<4x48xf32> to vector<1x48xf32>
    %cst_40 = arith.constant 0.000000e+00 : f32
    %127 = vector.broadcast %cst_40 : f32 to vector<48x4xf32>
    %128 = vector.extract_strided_slice %120 {offsets = [0, 0], sizes = [48, 44], strides = [1, 1]} : vector<48x48xf32> to vector<48x44xf32>
    %129 = tpu.concatenate %127, %128 in 1 : vector<48x4xf32>, vector<48x44xf32> -> vector<48x48xf32>
    %130 = vector.broadcast %125 : vector<1x48xf32> to vector<48x48xf32>
    %131 = arith.mulf %129, %130 : vector<48x48xf32>
    %132 = vector.extract_strided_slice %120 {offsets = [0, 4], sizes = [48, 44], strides = [1, 1]} : vector<48x48xf32> to vector<48x44xf32>
    %133 = tpu.concatenate %132, %127 in 1 : vector<48x44xf32>, vector<48x4xf32> -> vector<48x48xf32>
    %134 = vector.broadcast %126 : vector<1x48xf32> to vector<48x48xf32>
    %135 = arith.mulf %133, %134 : vector<48x48xf32>
    %136 = tpu.concatenate %131, %120, %135 in 0 : vector<48x48xf32>, vector<48x48xf32>, vector<48x48xf32> -> vector<144x48xf32>
    %c2_41 = arith.constant 2 : index
    %c0_42 = arith.constant 0 : index
    %c0_43 = arith.constant 0 : index
    %137 = vector.load %arg3[%c2_41, %c0_42, %c0_43] : memref<3x48x144xf32, #tpu.memory_space<vmem>>, vector<1x48x144xf32>
    %138 = vector.shape_cast %137 : vector<1x48x144xf32> to vector<48x144xf32>
    %cst_44 = arith.constant dense<0.000000e+00> : vector<48x48xf32>
    %139 = tpu.matmul %138, %136, %cst_44 {dimension_numbers = #tpu.dot_dimension_numbers<[1], [0], [0], [1], [0, 0, 1, 1], [], []>} : vector<48x144xf32>, vector<144x48xf32>, vector<48x48xf32> -> vector<48x48xf32>
    %c2_45 = arith.constant 2 : index
    %c0_46 = arith.constant 0 : index
    %c0_47 = arith.constant 0 : index
    %140 = vector.load %arg4[%c2_45, %c0_46, %c0_47] : memref<3x48x1xf32, #tpu.memory_space<vmem>>, vector<1x48x1xf32>
    %141 = vector.shape_cast %140 : vector<1x48x1xf32> to vector<48x1xf32>
    %142 = vector.broadcast %141 : vector<48x1xf32> to vector<48x48xf32>
    %143 = arith.addf %139, %142 : vector<48x48xf32>
    %cst_48 = arith.constant dense<0.000000e+00> : vector<48xf32>
    %144 = vector.multi_reduction <add>, %143, %cst_48 [1] : vector<48x48xf32> to vector<48xf32>
    %145 = vector.shape_cast %144 : vector<48xf32> to vector<48x1xf32>
    %cst_49 = arith.constant 4.800000e+01 : f32
    %146 = vector.broadcast %cst_49 : f32 to vector<48x1xf32>
    %147 = arith.divf %145, %146 : vector<48x1xf32>
    %148 = vector.broadcast %147 : vector<48x1xf32> to vector<48x48xf32>
    %149 = arith.subf %143, %148 : vector<48x48xf32>
    %150 = arith.mulf %149, %149 : vector<48x48xf32>
    %cst_50 = arith.constant dense<0.000000e+00> : vector<48xf32>
    %151 = vector.multi_reduction <add>, %150, %cst_50 [1] : vector<48x48xf32> to vector<48xf32>
    %152 = vector.shape_cast %151 : vector<48xf32> to vector<48x1xf32>
    %cst_51 = arith.constant 4.800000e+01 : f32
    %153 = vector.broadcast %cst_51 : f32 to vector<48x1xf32>
    %154 = arith.divf %152, %153 : vector<48x1xf32>
    %cst_52 = arith.constant 9.99999974E-6 : f32
    %155 = vector.broadcast %cst_52 : f32 to vector<48x1xf32>
    %156 = arith.addf %154, %155 : vector<48x1xf32>
    %157 = math.rsqrt %156 : vector<48x1xf32>
    %158 = vector.broadcast %157 : vector<48x1xf32> to vector<48x48xf32>
    %159 = arith.mulf %149, %158 : vector<48x48xf32>
    %160 = vector.broadcast %123 : vector<1x48xf32> to vector<48x48xf32>
    %161 = arith.mulf %159, %160 : vector<48x48xf32>
    %162 = vector.broadcast %124 : vector<1x48xf32> to vector<48x48xf32>
    %163 = arith.addf %161, %162 : vector<48x48xf32>
    %cst_53 = arith.constant 0.000000e+00 : f32
    %164 = vector.broadcast %cst_53 : f32 to vector<48x48xf32>
    %165 = arith.cmpf ogt, %163, %164 : vector<48x48xf32>
    %cst_54 = arith.constant 2.000000e-01 : f32
    %166 = vector.broadcast %cst_54 : f32 to vector<48x48xf32>
    %167 = arith.mulf %166, %163 : vector<48x48xf32>
    %168 = arith.select %165, %163, %167 : vector<48x48xi1>, vector<48x48xf32>
    %169 = arith.addf %120, %168 : vector<48x48xf32>
    %c0_55 = arith.constant 0 : index
    %c0_56 = arith.constant 0 : index
    %170 = vector.load %arg6[%c0_55, %c0_56] : memref<18x49xf32, #tpu.memory_space<vmem>>, vector<18x49xf32>
    %171 = vector.extract_strided_slice %170 {offsets = [0, 0], sizes = [18, 48], strides = [1, 1]} : vector<18x49xf32> to vector<18x48xf32>
    %cst_57 = arith.constant dense<0.000000e+00> : vector<18x48xf32>
    %172 = tpu.matmul %171, %169, %cst_57 {dimension_numbers = #tpu.dot_dimension_numbers<[1], [0], [0], [1], [0, 0, 1, 1], [], []>} : vector<18x48xf32>, vector<48x48xf32>, vector<18x48xf32> -> vector<18x48xf32>
    %173 = vector.extract_strided_slice %170 {offsets = [0, 48], sizes = [18, 1], strides = [1, 1]} : vector<18x49xf32> to vector<18x1xf32>
    %174 = vector.broadcast %173 : vector<18x1xf32> to vector<18x48xf32>
    %175 = arith.addf %172, %174 : vector<18x48xf32>
    %cst_58 = arith.constant 2.000000e+01 : f32
    %176 = vector.broadcast %cst_58 : f32 to vector<18x48xf32>
    %177 = arith.cmpf ogt, %175, %176 : vector<18x48xf32>
    %cst_59 = arith.constant 2.000000e+01 : f32
    %178 = vector.broadcast %cst_59 : f32 to vector<18x48xf32>
    %179 = arith.minimumf %175, %178 : vector<18x48xf32>
    %180 = math.exp %179 : vector<18x48xf32>
    %181 = math.log1p %180 : vector<18x48xf32>
    %182 = arith.select %177, %175, %181 : vector<18x48xi1>, vector<18x48xf32>
    %183 = arith.negf %175 : vector<18x48xf32>
    %184 = math.exp %183 : vector<18x48xf32>
    %cst_60 = arith.constant 1.000000e+00 : f32
    %185 = vector.broadcast %cst_60 : f32 to vector<18x48xf32>
    %186 = arith.addf %185, %184 : vector<18x48xf32>
    %187 = arith.divf %185, %186 : vector<18x48xf32>
    %188 = math.tanh %175 : vector<18x48xf32>
    %189 = tpu.iota {dimensions = array<i32: 0>} : vector<18x48xi32>
    %c16_i32 = arith.constant 16 : i32
    %190 = vector.broadcast %c16_i32 : i32 to vector<18x48xi32>
    %191 = arith.cmpi slt, %189, %190 : vector<18x48xi32>
    %c16_i32_61 = arith.constant 16 : i32
    %192 = vector.broadcast %c16_i32_61 : i32 to vector<18x48xi32>
    %193 = arith.cmpi eq, %189, %192 : vector<18x48xi32>
    %194 = arith.select %193, %187, %188 : vector<18x48xi1>, vector<18x48xf32>
    %195 = arith.select %191, %182, %194 : vector<18x48xi1>, vector<18x48xf32>
    %c0_62 = arith.constant 0 : index
    %c0_63 = arith.constant 0 : index
    %c0_64 = arith.constant 0 : index
    %196 = vector.load %arg7[%c0_62, %c0_63, %c0_64] : memref<1x18x48xf32, #tpu.memory_space<vmem>>, vector<1x18x48xf32>
    %197 = vector.shape_cast %196 : vector<1x18x48xf32> to vector<18x48xf32>
    %198 = vector.shape_cast %195 : vector<18x48xf32> to vector<1x18x48xf32>
    tpu.vector_store %arg7[%c0_62, %c0_63, %c0_64], %198 {strides = array<i32>} : memref<1x18x48xf32, #tpu.memory_space<vmem>>, vector<1x18x48xf32>,
    return
  }
  func.func @transform_0(%arg0: i32) -> (i32, i32, i32) {
    %c0_i32 = arith.constant 0 : i32
    %c0_i32_0 = arith.constant 0 : i32
    %c0_i32_1 = arith.constant 0 : i32
    return %arg0, %c0_i32, %c0_i32_0 : i32, i32, i32
  }
  func.func @transform_1(%arg0: i32) -> (i32, i32) {
    %c0_i32 = arith.constant 0 : i32
    %c0_i32_0 = arith.constant 0 : i32
    %c0_i32_1 = arith.constant 0 : i32
    return %c0_i32, %c0_i32_0 : i32, i32
  }
  func.func @transform_2(%arg0: i32) -> (i32, i32, i32) {
    %c0_i32 = arith.constant 0 : i32
    %c0_i32_0 = arith.constant 0 : i32
    %c0_i32_1 = arith.constant 0 : i32
    %c0_i32_2 = arith.constant 0 : i32
    return %c0_i32, %c0_i32_0, %c0_i32_1 : i32, i32, i32
  }
  func.func @transform_3(%arg0: i32) -> (i32, i32, i32) {
    %c0_i32 = arith.constant 0 : i32
    %c0_i32_0 = arith.constant 0 : i32
    %c0_i32_1 = arith.constant 0 : i32
    %c0_i32_2 = arith.constant 0 : i32
    return %c0_i32, %c0_i32_0, %c0_i32_1 : i32, i32, i32
  }
  func.func @transform_4(%arg0: i32) -> (i32, i32, i32) {
    %c0_i32 = arith.constant 0 : i32
    %c0_i32_0 = arith.constant 0 : i32
    %c0_i32_1 = arith.constant 0 : i32
    %c0_i32_2 = arith.constant 0 : i32
    return %c0_i32, %c0_i32_0, %c0_i32_1 : i32, i32, i32
  }
  func.func @transform_5(%arg0: i32) -> (i32, i32) {
    %c0_i32 = arith.constant 0 : i32
    %c0_i32_0 = arith.constant 0 : i32
    %c0_i32_1 = arith.constant 0 : i32
    return %c0_i32, %c0_i32_0 : i32, i32
  }
  func.func @transform_6(%arg0: i32) -> (i32, i32, i32) {
    %c0_i32 = arith.constant 0 : i32
    %c0_i32_0 = arith.constant 0 : i32
    %c0_i32_1 = arith.constant 0 : i32
    return %arg0, %c0_i32, %c0_i32_0 : i32, i32, i32
  }
}

</mosaic_0001>

<llo_original>
// kernel: tpu_custom_call.1
$region0: #{tpu_custom_call.1}
  #allocation0 [shape = 'u32[]', space=smem, size = 0x4, offset = 0x4, fixed_abs, tag = 'smem constant byte address 0x4 - core index']
  #allocation1 [shape = 'u32[144,128]{1,0:T(1,128)}', space=vmem, size = 0x12000, scoped, tag = 'internal scratch']
  %s0 = inlined_call_operand.vmem [shape: f32[2,3,48], index: 0, kind: input, shape index: {}]
  %s1 = inlined_call_operand.vmem [shape: f32[48,4], index: 1, kind: input, shape index: {}]
  %s2 = inlined_call_operand.hbm [shape: f32[3,48,144], index: 2, kind: input, shape index: {}]
  %s3 = inlined_call_operand.vmem [shape: f32[3,48,1], index: 3, kind: input, shape index: {}]
  %s4 = inlined_call_operand.vmem [shape: f32[3,4,48], index: 4, kind: input, shape index: {}]
  %s5 = inlined_call_operand.vmem [shape: f32[18,49], index: 5, kind: input, shape index: {}]
  %s6 = inlined_call_operand.vmem [shape: f32[2,18,48], index: 6, kind: output, shape index: {}]
  %s7 = sld [smem:[#allocation0]]
  $region61: #{tpu_custom_call.1} parent=0
    _
  %s9 = ssub.s32 1, %s7
  %s10 = scalar_select 0, %s9, %s7
  $region1: #{tpu_custom_call.1} parent=0
    #allocation2 [shape = 'u8[147456]{0}', space=vmem, size = 0x24000, scoped, tag = 'input window, operand 2, single buffered']
    #allocation3 [shape = 's32[2]{0}', space=sflag, size = 0x8, scoped, tag = 'scoped memory for tpu_custom_call.1']
    %11 = vsyncpa [#allocation3], 0
    loop: start=0, step=1, limit=4
    $region2: #{tpu_custom_call.1} parent=1 // loop_pre_header
      _
    $region3: #{tpu_custom_call.1} parent=1 // loop_header
      %s13 = sphi 0, %s17
      %p14 = scmp.ge.s32.totalorder %s13, 4
      %s23 = sphi 0, %s25
      %s26 = sphi 0, %s23
      %s27 = sphi 0, %s26
      %s43 = sphi 0, %s27
      %s47 = sphi 0, %s47
      %s49 = sphi 0, %s47
      %s50 = sphi 0, %s49
      %s64 = sphi 0, %s50
      %s68 = sphi 0, %s68
      %s70 = sphi 0, %s68
      %s71 = sphi 0, %s70
      %s85 = sphi 0, %s71
      %s89 = sphi 0, %s89
      %s91 = sphi 0, %s89
      %s92 = sphi 0, %s91
      %s106 = sphi 0, %s92
      %s110 = sphi 0, %s110
      %s112 = sphi 0, %s110
      %s113 = sphi 0, %s112
      %s127 = sphi 0, %s113
      %s131 = sphi 0, %s131
      %s133 = sphi 0, %s131
      %s134 = sphi 0, %s133
      %s148 = sphi 0, %s134
      %s154 = sphi 0, %s156
      %s157 = sphi 0, %s154
      %s158 = sphi 0, %s157
      %s174 = sphi 0, %s158
    $region4: #{tpu_custom_call.1} parent=1 // loop_header_branch
      %16 = sbr.rel (%p14) target = $region8
    $region5: #{tpu_custom_call.1} parent=1 // loop_body
      %s18 = ssub.s32 %s13, 1
      %s19 = ssub.s32 %s13, 2
      %s20 = sadd.s32 %s13, 1
      %s21 = ssub.s32 %s13, %s20
      %p22 = scmp.eq.s32.totalorder %s21, 0
      %s24 = sadd.s32 %s23, 1
      %s25 = scalar_select %p22, %s23, %s24
      %p28 = pneg %p22
      %p29 = scmp.eq.s32.totalorder %s13, 1
      %p30 = por %p28, %p29
      %p31 = scmp.ne.s32.totalorder %s23, %s26
      %p32 = scmp.eq.s32.totalorder %s13, 0
      %p33 = por %p31, %p32
      %p34 = scmp.ne.s32.totalorder %s23, %s26
      %p35 = scmp.eq.s32.totalorder %s18, 1
      %p36 = por %p34, %p35
      %p37 = scmp.ne.s32.totalorder %s26, %s27
      %p38 = scmp.eq.s32.totalorder %s18, 0
      %p39 = por %p37, %p38
      %p40 = scmp.ne.s32.totalorder %s26, %s27
      %p41 = scmp.eq.s32.totalorder %s19, 1
      %p42 = por %p40, %p41
      %p44 = scmp.ne.s32.totalorder %s27, %s43
      %p45 = scmp.eq.s32.totalorder %s19, 0
      %p46 = por %p44, %p45
      %s48 = sadd.s32 %s47, 1
      %p51 = scmp.eq.s32.totalorder %s13, 1
      %p52 = scmp.ne.s32.totalorder %s47, %s49
      %p53 = scmp.eq.s32.totalorder %s13, 0
      %p54 = por %p52, %p53
      %p55 = scmp.ne.s32.totalorder %s47, %s49
      %p56 = scmp.eq.s32.totalorder %s18, 1
      %p57 = por %p55, %p56
      %p58 = scmp.ne.s32.totalorder %s49, %s50
      %p59 = scmp.eq.s32.totalorder %s18, 0
      %p60 = por %p58, %p59
      %p61 = scmp.ne.s32.totalorder %s49, %s50
      %p62 = scmp.eq.s32.totalorder %s19, 1
      %p63 = por %p61, %p62
      %p65 = scmp.ne.s32.totalorder %s50, %s64
      %p66 = scmp.eq.s32.totalorder %s19, 0
      %p67 = por %p65, %p66
      %s69 = sadd.s32 %s68, 1
      %p72 = scmp.eq.s32.totalorder %s13, 1
      %p73 = scmp.ne.s32.totalorder %s68, %s70
      %p74 = scmp.eq.s32.totalorder %s13, 0
      %p75 = por %p73, %p74
      %p76 = scmp.ne.s32.totalorder %s68, %s70
      %p77 = scmp.eq.s32.totalorder %s18, 1
      %p78 = por %p76, %p77
      %p79 = scmp.ne.s32.totalorder %s70, %s71
      %p80 = scmp.eq.s32.totalorder %s18, 0
      %p81 = por %p79, %p80
      %p82 = scmp.ne.s32.totalorder %s70, %s71
      %p83 = scmp.eq.s32.totalorder %s19, 1
      %p84 = por %p82, %p83
      %p86 = scmp.ne.s32.totalorder %s71, %s85
      %p87 = scmp.eq.s32.totalorder %s19, 0
      %p88 = por %p86, %p87
      %s90 = sadd.s32 %s89, 1
      %p93 = scmp.eq.s32.totalorder %s13, 1
      %p94 = scmp.ne.s32.totalorder %s89, %s91
      %p95 = scmp.eq.s32.totalorder %s13, 0
      %p96 = por %p94, %p95
      %p97 = scmp.ne.s32.totalorder %s89, %s91
      %p98 = scmp.eq.s32.totalorder %s18, 1
      %p99 = por %p97, %p98
      %p100 = scmp.ne.s32.totalorder %s91, %s92
      %p101 = scmp.eq.s32.totalorder %s18, 0
      %p102 = por %p100, %p101
      %p103 = scmp.ne.s32.totalorder %s91, %s92
      %p104 = scmp.eq.s32.totalorder %s19, 1
      %p105 = por %p103, %p104
      %p107 = scmp.ne.s32.totalorder %s92, %s106
      %p108 = scmp.eq.s32.totalorder %s19, 0
      %p109 = por %p107, %p108
      %s111 = sadd.s32 %s110, 1
      %p114 = scmp.eq.s32.totalorder %s13, 1
      %p115 = scmp.ne.s32.totalorder %s110, %s112
      %p116 = scmp.eq.s32.totalorder %s13, 0
      %p117 = por %p115, %p116
      %p118 = scmp.ne.s32.totalorder %s110, %s112
      %p119 = scmp.eq.s32.totalorder %s18, 1
      %p120 = por %p118, %p119
      %p121 = scmp.ne.s32.totalorder %s112, %s113
      %p122 = scmp.eq.s32.totalorder %s18, 0
      %p123 = por %p121, %p122
      %p124 = scmp.ne.s32.totalorder %s112, %s113
      %p125 = scmp.eq.s32.totalorder %s19, 1
      %p126 = por %p124, %p125
      %p128 = scmp.ne.s32.totalorder %s113, %s127
      %p129 = scmp.eq.s32.totalorder %s19, 0
      %p130 = por %p128, %p129
      %s132 = sadd.s32 %s131, 1
      %p135 = scmp.eq.s32.totalorder %s13, 1
      %p136 = scmp.ne.s32.totalorder %s131, %s133
      %p137 = scmp.eq.s32.totalorder %s13, 0
      %p138 = por %p136, %p137
      %p139 = scmp.ne.s32.totalorder %s131, %s133
      %p140 = scmp.eq.s32.totalorder %s18, 1
      %p141 = por %p139, %p140
      %p142 = scmp.ne.s32.totalorder %s133, %s134
      %p143 = scmp.eq.s32.totalorder %s18, 0
      %p144 = por %p142, %p143
      %p145 = scmp.ne.s32.totalorder %s133, %s134
      %p146 = scmp.eq.s32.totalorder %s19, 1
      %p147 = por %p145, %p146
      %p149 = scmp.ne.s32.totalorder %s134, %s148
      %p150 = scmp.eq.s32.totalorder %s19, 0
      %p151 = por %p149, %p150
      %s152 = ssub.s32 %s13, %s20
      %p153 = scmp.eq.s32.totalorder %s152, 0
      %s155 = sadd.s32 %s154, 1
      %s156 = scalar_select %p153, %s154, %s155
      %p159 = pneg %p153
      %p160 = scmp.eq.s32.totalorder %s13, 1
      %p161 = por %p159, %p160
      %p162 = scmp.ne.s32.totalorder %s154, %s157
      %p163 = scmp.eq.s32.totalorder %s13, 0
      %p164 = por %p162, %p163
      %p165 = scmp.ne.s32.totalorder %s154, %s157
      %p166 = scmp.eq.s32.totalorder %s18, 1
      %p167 = por %p165, %p166
      %p168 = scmp.ne.s32.totalorder %s157, %s158
      %p169 = scmp.eq.s32.totalorder %s18, 0
      %p170 = por %p168, %p169
      %p171 = scmp.ne.s32.totalorder %s157, %s158
      %p172 = scmp.eq.s32.totalorder %s19, 1
      %p173 = por %p171, %p172
      %p175 = scmp.ne.s32.totalorder %s158, %s174
      %p176 = scmp.eq.s32.totalorder %s19, 0
      %p177 = por %p175, %p176
      %p178 = scmp.le.s32.totalorder 1, %s13
      %p179 = scmp.lt.s32.totalorder %s13, 3
      %p180 = pnand %p178, %p179
      %p181 = pneg %p180
      // Predicated region
      $region9: #{tpu_custom_call.1} parent=5 // pred_check
        _
      $region10: #{tpu_custom_call.1} parent=5 // pred_check_branch
        %183 = sbr.rel (%p180) target = $region12
      $region11: #{tpu_custom_call.1} parent=5 // pred_region
        %s184 = ssub.s32 %s13, 1
        // Predicated region
        $region13: #{tpu_custom_call.1} parent=11 // pred_check
          %p185 = pneg %p60
        $region14: #{tpu_custom_call.1} parent=11 // pred_check_branch
          %187 = sbr.rel (%p185) target = $region16
        $region15: #{tpu_custom_call.1} parent=11 // pred_region
          _
        $region16: #{tpu_custom_call.1} parent=11 // pred_fallthru
          _
        // Predicated region
        $region17: #{tpu_custom_call.1} parent=11 // pred_check
          %p188 = pneg %p81
        $region18: #{tpu_custom_call.1} parent=11 // pred_check_branch
          %190 = sbr.rel (%p188) target = $region20
        $region19: #{tpu_custom_call.1} parent=11 // pred_region
          %s192 = ssub.s32 4608, 4608
          %193 = vsyncadd [#allocation3], %s192
          %s194 = sshll.u32 [#allocation2], 4
          %s195 = int_to_ptr.vmem [resolvable:$true] %s194
          %200 = dma.hbm_to_vmem [thread:$0]  %s2, 4608, %s195, [#allocation3], 256, 256, 16
        $region20: #{tpu_custom_call.1} parent=11 // pred_fallthru
          _
        // Predicated region
        $region21: #{tpu_custom_call.1} parent=11 // pred_check
          %p201 = pneg %p102
        $region22: #{tpu_custom_call.1} parent=11 // pred_check_branch
          %203 = sbr.rel (%p201) target = $region24
        $region23: #{tpu_custom_call.1} parent=11 // pred_region
          _
        $region24: #{tpu_custom_call.1} parent=11 // pred_fallthru
          _
        // Predicated region
        $region25: #{tpu_custom_call.1} parent=11 // pred_check
          %p204 = pneg %p123
        $region26: #{tpu_custom_call.1} parent=11 // pred_check_branch
          %206 = sbr.rel (%p204) target = $region28
        $region27: #{tpu_custom_call.1} parent=11 // pred_region
          _
        $region28: #{tpu_custom_call.1} parent=11 // pred_fallthru
          _
        // Predicated region
        $region29: #{tpu_custom_call.1} parent=11 // pred_check
          %p207 = pneg %p144
        $region30: #{tpu_custom_call.1} parent=11 // pred_check_branch
          %209 = sbr.rel (%p207) target = $region32
        $region31: #{tpu_custom_call.1} parent=11 // pred_region
          _
        $region32: #{tpu_custom_call.1} parent=11 // pred_fallthru
          _
      $region12: #{tpu_custom_call.1} parent=5 // pred_fallthru
        _
      %p210 = scmp.lt.s32.totalorder %s13, 2
      // Predicated region
      $region33: #{tpu_custom_call.1} parent=5 // pred_check
        %p211 = pneg %p210
      $region34: #{tpu_custom_call.1} parent=5 // pred_check_branch
        %213 = sbr.rel (%p211) target = $region36
      $region35: #{tpu_custom_call.1} parent=5 // pred_region
        // Predicated region
        $region37: #{tpu_custom_call.1} parent=35 // pred_check
          %p214 = pneg %p33
        $region38: #{tpu_custom_call.1} parent=35 // pred_check_branch
          %216 = sbr.rel (%p214) target = $region40
        $region39: #{tpu_custom_call.1} parent=35 // pred_region
          %p217 = scmp.lt.s32.totalorder %s13, 1
          %s218 = scalar_select %p217, %s13, 1
          %s219 = smul.addr %s218, 4
          %s220 = scalar_lea.vmem %s0, %s219
        $region40: #{tpu_custom_call.1} parent=35 // pred_fallthru
          _
      $region36: #{tpu_custom_call.1} parent=5 // pred_fallthru
        _
      %p221 = scmp.le.s32.totalorder 1, %s13
      %p222 = scmp.lt.s32.totalorder %s13, 3
      %p223 = pnand %p221, %p222
      %p224 = pneg %p223
      // Predicated region
      $region41: #{tpu_custom_call.1} parent=5 // pred_check
        _
      $region42: #{tpu_custom_call.1} parent=5 // pred_check_branch
        %226 = sbr.rel (%p223) target = $region44
      $region43: #{tpu_custom_call.1} parent=5 // pred_region
        %s227 = ssub.s32 %s13, 1
        // Predicated region
        $region45: #{tpu_custom_call.1} parent=43 // pred_check
          %p228 = pneg %p81
        $region46: #{tpu_custom_call.1} parent=43 // pred_check_branch
          %230 = sbr.rel (%p228) target = $region48
        $region47: #{tpu_custom_call.1} parent=43 // pred_region
          %231 = dma.done [#allocation3], 4608
        $region48: #{tpu_custom_call.1} parent=43 // pred_fallthru
          _
        %p232 = scmp.lt.s32.totalorder %s18, 1
        %s233 = scalar_select %p232, %s18, 1
        %s234 = smul.addr %s233, 4
        %s235 = scalar_lea.vmem %s0, %s234
        %p236 = pneg %p39
        %p237 = pneg %p36
        %p238 = pneg %p60
        %p239 = pneg %p57
        %p240 = pneg %p81
        %p241 = pneg %p78
        %p242 = pneg %p102
        %p243 = pneg %p99
        %p244 = pneg %p123
        %p245 = pneg %p120
        %p246 = pneg %p144
        %p247 = pneg %p141
        %p248 = pneg %p170
        %p249 = pneg %p167
        %p250 = scmp.lt.s32.totalorder %s18, 1
        %s251 = scalar_select %p250, %s18, 1
        %s252 = smul.addr %s251, 3
        %s253 = smul.addr %s252, 8
        %s254 = scalar_lea.vmem %s6, %s253
        %p255 = scmp.lt.s32.totalorder %s18, 1
        %s256 = scalar_select %p255, %s18, 1
        %s257 = smul.addr %s256, 4
        %s258 = scalar_lea.vmem %s0, %s257
        %p259 = scmp.lt.s32.totalorder %s18, 1
        %s260 = scalar_select %p259, %s18, 1
        %s261 = smul.addr %s260, 3
        %s262 = smul.addr %s261, 8
        %s263 = scalar_lea.vmem %s6, %s262
        %v264 = vld [vmem:[%s258] sm:$0x7]
        %v265 = vld [vmem:[%s1] sm:$0xff]
        %v266 = vld [vmem:[%s1 + $0x8] sm:$0xff]
        %v267 = vld [vmem:[%s1 + $0x10] sm:$0xff]
        %v268 = vld [vmem:[%s1 + $0x18] sm:$0xff]
        %v269 = vld [vmem:[%s1 + $0x20] sm:$0xff]
        %v270 = vld [vmem:[%s1 + $0x28] sm:$0xff]
        %272 = vset.pattern.permute.xlu0 0
        %273 = vperm.xlu0 %272, %v265
        %v274 = vpop.permute.xlu0 %273
        %277 = vset.pattern.permute.xlu0 0
        %278 = vperm.xlu0 %277, %v266
        %v279 = vpop.permute.xlu0 %278
        %282 = vset.pattern.permute.xlu0 0
        %283 = vperm.xlu0 %282, %v267
        %v284 = vpop.permute.xlu0 %283
        %287 = vset.pattern.permute.xlu0 0
        %288 = vperm.xlu0 %287, %v268
        %v289 = vpop.permute.xlu0 %288
        %292 = vset.pattern.permute.xlu0 0
        %293 = vperm.xlu0 %292, %v269
        %v294 = vpop.permute.xlu0 %293
        %297 = vset.pattern.permute.xlu0 0
        %298 = vperm.xlu0 %297, %v270
        %v299 = vpop.permute.xlu0 %298
        %v301 = vlaneseq
        %v302 = vshrl.u32 %v301, 7
        %v303 = vsub.s32 0, %v302
        %v304 = vrot.slane %v264, %v303
        %v305 = vmul.f32 %v274, %v304
        %v306 = vmul.f32 %v279, %v304
        %v307 = vmul.f32 %v284, %v304
        %v308 = vmul.f32 %v289, %v304
        %v309 = vmul.f32 %v294, %v304
        %v310 = vmul.f32 %v299, %v304
        %311 = vset.pattern.permute.xlu0 1
        %312 = vperm.xlu0 %311, %v265
        %v313 = vpop.permute.xlu0 %312
        %315 = vset.pattern.permute.xlu0 1
        %316 = vperm.xlu0 %315, %v266
        %v317 = vpop.permute.xlu0 %316
        %319 = vset.pattern.permute.xlu0 1
        %320 = vperm.xlu0 %319, %v267
        %v321 = vpop.permute.xlu0 %320
        %323 = vset.pattern.permute.xlu0 1
        %324 = vperm.xlu0 %323, %v268
        %v325 = vpop.permute.xlu0 %324
        %327 = vset.pattern.permute.xlu0 1
        %328 = vperm.xlu0 %327, %v269
        %v329 = vpop.permute.xlu0 %328
        %331 = vset.pattern.permute.xlu0 1
        %332 = vperm.xlu0 %331, %v270
        %v333 = vpop.permute.xlu0 %332
        %v335 = vlaneseq
        %v336 = vshrl.u32 %v335, 7
        %v337 = vsub.s32 1, %v336
        %v338 = vrot.slane %v264, %v337
        %v339 = vmul.f32 %v313, %v338
        %v340 = vmul.f32 %v317, %v338
        %v341 = vmul.f32 %v321, %v338
        %v342 = vmul.f32 %v325, %v338
        %v343 = vmul.f32 %v329, %v338
        %v344 = vmul.f32 %v333, %v338
        %v345 = vadd.f32 %v305, %v339
        %v346 = vadd.f32 %v306, %v340
        %v347 = vadd.f32 %v307, %v341
        %v348 = vadd.f32 %v308, %v342
        %v349 = vadd.f32 %v309, %v343
        %v350 = vadd.f32 %v310, %v344
        %351 = vset.pattern.permute.xlu0 2
        %352 = vperm.xlu0 %351, %v265
        %v353 = vpop.permute.xlu0 %352
        %355 = vset.pattern.permute.xlu0 2
        %356 = vperm.xlu0 %355, %v266
        %v357 = vpop.permute.xlu0 %356
        %359 = vset.pattern.permute.xlu0 2
        %360 = vperm.xlu0 %359, %v267
        %v361 = vpop.permute.xlu0 %360
        %363 = vset.pattern.permute.xlu0 2
        %364 = vperm.xlu0 %363, %v268
        %v365 = vpop.permute.xlu0 %364
        %367 = vset.pattern.permute.xlu0 2
        %368 = vperm.xlu0 %367, %v269
        %v369 = vpop.permute.xlu0 %368
        %371 = vset.pattern.permute.xlu0 2
        %372 = vperm.xlu0 %371, %v270
        %v373 = vpop.permute.xlu0 %372
        %v375 = vlaneseq
        %v376 = vshrl.u32 %v375, 7
        %v377 = vsub.s32 2, %v376
        %v378 = vrot.slane %v264, %v377
        %v379 = vmul.f32 %v353, %v378
        %v380 = vmul.f32 %v357, %v378
        %v381 = vmul.f32 %v361, %v378
        %v382 = vmul.f32 %v365, %v378
        %v383 = vmul.f32 %v369, %v378
        %v384 = vmul.f32 %v373, %v378
        %v385 = vadd.f32 %v345, %v379
        %v386 = vadd.f32 %v346, %v380
        %v387 = vadd.f32 %v347, %v381
        %v388 = vadd.f32 %v348, %v382
        %v389 = vadd.f32 %v349, %v383
        %v390 = vadd.f32 %v350, %v384
        %391 = vset.pattern.permute.xlu0 3
        %392 = vperm.xlu0 %391, %v265
        %v393 = vpop.permute.xlu0 %392
        %395 = vset.pattern.permute.xlu0 3
        %396 = vperm.xlu0 %395, %v266
        %v397 = vpop.permute.xlu0 %396
        %399 = vset.pattern.permute.xlu0 3
        %400 = vperm.xlu0 %399, %v267
        %v401 = vpop.permute.xlu0 %400
        %403 = vset.pattern.permute.xlu0 3
        %404 = vperm.xlu0 %403, %v268
        %v405 = vpop.permute.xlu0 %404
        %407 = vset.pattern.permute.xlu0 3
        %408 = vperm.xlu0 %407, %v269
        %v409 = vpop.permute.xlu0 %408
        %411 = vset.pattern.permute.xlu0 3
        %412 = vperm.xlu0 %411, %v270
        %v413 = vpop.permute.xlu0 %412
        %v415 = vadd.f32 %v385, %v393
        %v416 = vadd.f32 %v386, %v397
        %v417 = vadd.f32 %v387, %v401
        %v418 = vadd.f32 %v388, %v405
        %v419 = vadd.f32 %v389, %v409
        %v420 = vadd.f32 %v390, %v413
        %v421 = vld [vmem:[%s4] sm:$0xf]
        %428 = vrot.lane.b32.xlu0 %v415, 1
        %v429 = vpop.permute.xlu0 %428
        %430 = vrot.lane.b32.xlu0 %v416, 1
        %v431 = vpop.permute.xlu0 %430
        %432 = vrot.lane.b32.xlu0 %v417, 1
        %v433 = vpop.permute.xlu0 %432
        %434 = vrot.lane.b32.xlu0 %v418, 1
        %v435 = vpop.permute.xlu0 %434
        %436 = vrot.lane.b32.xlu0 %v419, 1
        %v437 = vpop.permute.xlu0 %436
        %438 = vrot.lane.b32.xlu0 %v420, 1
        %v439 = vpop.permute.xlu0 %438
        %vm446 = vcmask 7168
        %v447 = vsel %vm446, 0.0, %v429
        %v448 = vsel %vm446, 0.0, %v431
        %v449 = vsel %vm446, 0.0, %v433
        %v450 = vsel %vm446, 0.0, %v435
        %v451 = vsel %vm446, 0.0, %v437
        %v452 = vsel %vm446, 0.0, %v439
        %v453 = vlaneseq
        %v454 = vshrl.u32 %v453, 7
        %v455 = vsub.s32 2, %v454
        %v456 = vrot.slane %v421, %v455
        %v457 = vmul.f32 %v447, %v456
        %v458 = vmul.f32 %v448, %v456
        %v459 = vmul.f32 %v449, %v456
        %v460 = vmul.f32 %v450, %v456
        %v461 = vmul.f32 %v451, %v456
        %v462 = vmul.f32 %v452, %v456
        %463 = vrot.lane.b32.xlu0 %v415, 127
        %v464 = vpop.permute.xlu0 %463
        %465 = vrot.lane.b32.xlu0 %v416, 127
        %v466 = vpop.permute.xlu0 %465
        %467 = vrot.lane.b32.xlu0 %v417, 127
        %v468 = vpop.permute.xlu0 %467
        %469 = vrot.lane.b32.xlu0 %v418, 127
        %v470 = vpop.permute.xlu0 %469
        %471 = vrot.lane.b32.xlu0 %v419, 127
        %v472 = vpop.permute.xlu0 %471
        %473 = vrot.lane.b32.xlu0 %v420, 127
        %v474 = vpop.permute.xlu0 %473
        %vm481 = vcmask 384000
        %v482 = vsel %vm481, %v464, 0.0
        %v483 = vsel %vm481, %v466, 0.0
        %v484 = vsel %vm481, %v468, 0.0
        %v485 = vsel %vm481, %v470, 0.0
        %v486 = vsel %vm481, %v472, 0.0
        %v487 = vsel %vm481, %v474, 0.0
        %v488 = vlaneseq
        %v489 = vshrl.u32 %v488, 7
        %v490 = vsub.s32 3, %v489
        %v491 = vrot.slane %v421, %v490
        %v492 = vmul.f32 %v482, %v491
        %v493 = vmul.f32 %v483, %v491
        %v494 = vmul.f32 %v484, %v491
        %v495 = vmul.f32 %v485, %v491
        %v496 = vmul.f32 %v486, %v491
        %v497 = vmul.f32 %v487, %v491
        %v498 = vld [vmem:[#allocation2] sm:$0xff]
        %v499 = vld [vmem:[#allocation2 + $0x8] sm:$0xff]
        %v500 = vld [vmem:[#allocation2 + $0x10] sm:$0xff]
        %v501 = vld [vmem:[#allocation2 + $0x18] sm:$0xff]
        %v502 = vld [vmem:[#allocation2 + $0x20] sm:$0xff]
        %v503 = vld [vmem:[#allocation2 + $0x28] sm:$0xff]
        %v504 = vld [vmem:[#allocation2 + $0x30] sm:$0xff]
        %v505 = vld [vmem:[#allocation2 + $0x38] sm:$0xff]
        %v506 = vld [vmem:[#allocation2 + $0x40] sm:$0xff]
        %v507 = vld [vmem:[#allocation2 + $0x48] sm:$0xff]
        %v508 = vld [vmem:[#allocation2 + $0x50] sm:$0xff]
        %v509 = vld [vmem:[#allocation2 + $0x58] sm:$0xff]
        %v510 = vld [vmem:[%s3] sm:$0xff]
        %v511 = vld [vmem:[%s3 + $0x8] sm:$0xff]
        %v512 = vld [vmem:[%s3 + $0x10] sm:$0xff]
        %v513 = vld [vmem:[%s3 + $0x18] sm:$0xff]
        %v514 = vld [vmem:[%s3 + $0x20] sm:$0xff]
        %v515 = vld [vmem:[%s3 + $0x28] sm:$0xff]
        %517 = vset.pattern.permute.xlu0 0
        %518 = vperm.xlu0 %517, %v510
        %v519 = vpop.permute.xlu0 %518
        %522 = vset.pattern.permute.xlu0 0
        %523 = vperm.xlu0 %522, %v511
        %v524 = vpop.permute.xlu0 %523
        %527 = vset.pattern.permute.xlu0 0
        %528 = vperm.xlu0 %527, %v512
        %v529 = vpop.permute.xlu0 %528
        %532 = vset.pattern.permute.xlu0 0
        %533 = vperm.xlu0 %532, %v513
        %v534 = vpop.permute.xlu0 %533
        %537 = vset.pattern.permute.xlu0 0
        %538 = vperm.xlu0 %537, %v514
        %v539 = vpop.permute.xlu0 %538
        %542 = vset.pattern.permute.xlu0 0
        %543 = vperm.xlu0 %542, %v515
        %v544 = vpop.permute.xlu0 %543
        %vm546 = vcmask 130048
        %v548 = vsel %vm546, %v499, 0
        %v551 = vsel %vm546, %v501, 0
        %v554 = vsel %vm546, %v503, 0
        %v557 = vsel %vm546, %v505, 0
        %v560 = vsel %vm546, %v507, 0
        %v563 = vsel %vm546, %v509, 0
        %565 = vmatprep.subr.mxu0 0.0
        %566 = vmatpush1.msra.mxu0 %v457
        %567 = vmatprep.subr.mxu0 0.0
        %568 = vmatpush1.msra.mxu0 %v458
        %569 = vmatprep.subr.mxu0 0.0
        %570 = vmatpush1.msra.mxu0 %v459
        %571 = vmatprep.subr.mxu0 0.0
        %572 = vmatpush1.msra.mxu0 %v460
        %573 = vmatprep.subr.mxu0 0.0
        %574 = vmatpush1.msra.mxu0 %v461
        %575 = vmatprep.subr.mxu0 0.0
        %576 = vmatpush1.msra.mxu0 %v462
        %577 = vmatprep.subr.mxu0 0.0
        %578 = vmatpush1.msra.mxu0 %v415
        %579 = vmatprep.subr.mxu0 0.0
        %580 = vmatpush1.msra.mxu0 %v416
        %581 = vmatprep.subr.mxu0 0.0
        %582 = vmatpush1.msra.mxu0 %v417
        %583 = vmatprep.subr.mxu0 0.0
        %584 = vmatpush1.msra.mxu0 %v418
        %585 = vmatprep.subr.mxu0 0.0
        %586 = vmatpush1.msra.mxu0 %v419
        %587 = vmatprep.subr.mxu0 0.0
        %588 = vmatpush1.msra.mxu0 %v420
        %589 = vmatprep.subr.mxu0 0.0
        %590 = vmatpush1.msra.mxu0 %v492
        %591 = vmatprep.subr.mxu0 0.0
        %592 = vmatpush1.msra.mxu0 %v493
        %593 = vmatprep.subr.mxu0 0.0
        %594 = vmatpush1.msra.mxu0 %v494
        %595 = vmatprep.subr.mxu0 0.0
        %596 = vmatpush1.msra.mxu0 %v495
        %597 = vmatprep.subr.mxu0 0.0
        %598 = vmatpush1.msra.mxu0 %v496
        %599 = vmatprep.subr.mxu0 0.0
        %600 = vmatpush1.msra.mxu0 %v497
        %601 = vmatprep.subr.mxu0 0.0
        %602 = vmatpush1.msra.mxu0 0.0
        %603 = vmatprep.subr.mxu0 0.0
        %604 = vmatpush1.msra.mxu0 0.0
        %605 = vmatprep.subr.mxu0 0.0
        %606 = vmatpush1.msra.mxu0 0.0
        %607 = vmatprep.subr.mxu0 0.0
        %608 = vmatpush1.msra.mxu0 0.0
        %609 = vmatprep.subr.mxu0 0.0
        %610 = vmatpush1.msra.mxu0 0.0
        %611 = vmatprep.subr.mxu0 0.0
        %612 = vmatpush1.msra.mxu0 0.0
        %613 = vmatprep.subr.mxu0 0.0
        %614 = vmatpush1.msra.mxu0 0.0
        %615 = vmatprep.subr.mxu0 0.0
        %616 = vmatpush1.msra.mxu0 0.0
        %617 = vmatprep.subr.mxu0 0.0
        %618 = vmatpush1.msra.mxu0 0.0
        %619 = vmatprep.subr.mxu0 0.0
        %620 = vmatpush1.msra.mxu0 0.0
        %621 = vmatprep.subr.mxu0 0.0
        %622 = vmatpush1.msra.mxu0 0.0
        %623 = vmatprep.subr.mxu0 0.0
        %624 = vmatpush1.msra.mxu0 0.0
        %625 = vmatprep.subr.mxu0 0.0
        %626 = vmatpush1.msra.mxu0 0.0
        %627 = vmatprep.subr.mxu0 0.0
        %628 = vmatpush1.msra.mxu0 0.0
        %629 = vmatprep.mubr.f32.mxu0 %v548
        %630 = vmatmul.mubr.f32.gmra.mrb[0].mxu0 %v498
        %v631 = vpop.f32.mrb[0].mxu0
        %v632 = vadd.f32 %v519, %v631
        %v633 = vpop.f32.mrb[0].mxu0
        %634 = vmatprep.mubr.f32.mxu0 %v551
        %635 = vmatmul.mubr.f32.gmra.mrb[0].mxu0 %v500
        %v636 = vpop.f32.mrb[0].mxu0
        %v637 = vadd.f32 %v524, %v636
        %v638 = vpop.f32.mrb[0].mxu0
        %639 = vmatprep.mubr.f32.mxu0 %v554
        %640 = vmatmul.mubr.f32.gmra.mrb[0].mxu0 %v502
        %v641 = vpop.f32.mrb[0].mxu0
        %v642 = vadd.f32 %v529, %v641
        %v643 = vpop.f32.mrb[0].mxu0
        %644 = vmatprep.mubr.f32.mxu0 %v557
        %645 = vmatmul.mubr.f32.gmra.mrb[0].mxu0 %v504
        %v646 = vpop.f32.mrb[0].mxu0
        %v647 = vadd.f32 %v534, %v646
        %v648 = vpop.f32.mrb[0].mxu0
        %649 = vmatprep.mubr.f32.mxu0 %v560
        %650 = vmatmul.mubr.f32.gmra.mrb[0].mxu0 %v506
        %v651 = vpop.f32.mrb[0].mxu0
        %v652 = vadd.f32 %v539, %v651
        %v653 = vpop.f32.mrb[0].mxu0
        %654 = vmatprep.mubr.f32.mxu0 %v563
        %655 = vmatmul.mubr.f32.gmra.mrb[0].mxu0 %v508
        %v656 = vpop.f32.mrb[0].mxu0
        %v657 = vadd.f32 %v544, %v656
        %v658 = vpop.f32.mrb[0].mxu0
        %659 = vdwg.mxu0
        %vm660 = vcmask 392192
        %v661 = vsel %vm660, %v632, 0.0
        %662 = vadd.xlane.f32.xlu0 %v661
        %v663 = vpop.xlane.xlu0 %662
        %v664 = vsel %vm660, %v637, 0.0
        %665 = vadd.xlane.f32.xlu0 %v664
        %v666 = vpop.xlane.xlu0 %665
        %v667 = vsel %vm660, %v642, 0.0
        %668 = vadd.xlane.f32.xlu0 %v667
        %v669 = vpop.xlane.xlu0 %668
        %v670 = vsel %vm660, %v647, 0.0
        %671 = vadd.xlane.f32.xlu0 %v670
        %v672 = vpop.xlane.xlu0 %671
        %v673 = vsel %vm660, %v652, 0.0
        %674 = vadd.xlane.f32.xlu0 %v673
        %v675 = vpop.xlane.xlu0 %674
        %v676 = vsel %vm660, %v657, 0.0
        %677 = vadd.xlane.f32.xlu0 %v676
        %v678 = vpop.xlane.xlu0 %677
        %v679 = vrcp.pop 48.0
        %v680 = vmul.f32 %v663, %v679
        %v681 = vmul.f32 %v666, %v679
        %v682 = vmul.f32 %v669, %v679
        %v683 = vmul.f32 %v672, %v679
        %v684 = vmul.f32 %v675, %v679
        %v685 = vmul.f32 %v678, %v679
        %v686 = vsub.f32 %v632, %v680
        %v687 = vsub.f32 %v637, %v681
        %v688 = vsub.f32 %v642, %v682
        %v689 = vsub.f32 %v647, %v683
        %v690 = vsub.f32 %v652, %v684
        %v691 = vsub.f32 %v657, %v685
        %v692 = vmul.f32 %v686, %v686
        %v693 = vmul.f32 %v687, %v687
        %v694 = vmul.f32 %v688, %v688
        %v695 = vmul.f32 %v689, %v689
        %v696 = vmul.f32 %v690, %v690
        %v697 = vmul.f32 %v691, %v691
        %v698 = vsel %vm660, %v692, 0.0
        %699 = vadd.xlane.f32.xlu0 %v698
        %v700 = vpop.xlane.xlu0 %699
        %v701 = vsel %vm660, %v693, 0.0
        %702 = vadd.xlane.f32.xlu0 %v701
        %v703 = vpop.xlane.xlu0 %702
        %v704 = vsel %vm660, %v694, 0.0
        %705 = vadd.xlane.f32.xlu0 %v704
        %v706 = vpop.xlane.xlu0 %705
        %v707 = vsel %vm660, %v695, 0.0
        %708 = vadd.xlane.f32.xlu0 %v707
        %v709 = vpop.xlane.xlu0 %708
        %v710 = vsel %vm660, %v696, 0.0
        %711 = vadd.xlane.f32.xlu0 %v710
        %v712 = vpop.xlane.xlu0 %711
        %v713 = vsel %vm660, %v697, 0.0
        %714 = vadd.xlane.f32.xlu0 %v713
        %v715 = vpop.xlane.xlu0 %714
        %v716 = vmul.f32 %v700, %v679
        %v717 = vmul.f32 %v703, %v679
        %v718 = vmul.f32 %v706, %v679
        %v719 = vmul.f32 %v709, %v679
        %v720 = vmul.f32 %v712, %v679
        %v721 = vmul.f32 %v715, %v679
        %v722 = vadd.f32 %v716, 1e-05
        %v723 = vadd.f32 %v717, 1e-05
        %v724 = vadd.f32 %v718, 1e-05
        %v725 = vadd.f32 %v719, 1e-05
        %v726 = vadd.f32 %v720, 1e-05
        %v727 = vadd.f32 %v721, 1e-05
        %v728 = vrsqrt.pop %v722
        %v729 = vrsqrt.pop %v723
        %v730 = vrsqrt.pop %v724
        %v731 = vrsqrt.pop %v725
        %v732 = vrsqrt.pop %v726
        %v733 = vrsqrt.pop %v727
        %v734 = vmul.f32 %v686, %v728
        %v735 = vmul.f32 %v687, %v729
        %v736 = vmul.f32 %v688, %v730
        %v737 = vmul.f32 %v689, %v731
        %v738 = vmul.f32 %v690, %v732
        %v739 = vmul.f32 %v691, %v733
        %v740 = vlaneseq
        %v741 = vshrl.u32 %v740, 7
        %v742 = vsub.s32 0, %v741
        %v743 = vrot.slane %v421, %v742
        %v744 = vmul.f32 %v734, %v743
        %v745 = vmul.f32 %v735, %v743
        %v746 = vmul.f32 %v736, %v743
        %v747 = vmul.f32 %v737, %v743
        %v748 = vmul.f32 %v738, %v743
        %v749 = vmul.f32 %v739, %v743
        %v750 = vlaneseq
        %v751 = vshrl.u32 %v750, 7
        %v752 = vsub.s32 1, %v751
        %v753 = vrot.slane %v421, %v752
        %v754 = vadd.f32 %v744, %v753
        %v755 = vadd.f32 %v745, %v753
        %v756 = vadd.f32 %v746, %v753
        %v757 = vadd.f32 %v747, %v753
        %v758 = vadd.f32 %v748, %v753
        %v759 = vadd.f32 %v749, %v753
        %vm760 = vcmp.gt.f32.partialorder %v754, 0.0
        %vm761 = vcmp.gt.f32.partialorder %v755, 0.0
        %vm762 = vcmp.gt.f32.partialorder %v756, 0.0
        %vm763 = vcmp.gt.f32.partialorder %v757, 0.0
        %vm764 = vcmp.gt.f32.partialorder %v758, 0.0
        %vm765 = vcmp.gt.f32.partialorder %v759, 0.0
        %v766 = vmul.f32 %v754, 0.2
        %v767 = vmul.f32 %v755, 0.2
        %v768 = vmul.f32 %v756, 0.2
        %v769 = vmul.f32 %v757, 0.2
        %v770 = vmul.f32 %v758, 0.2
        %v771 = vmul.f32 %v759, 0.2
        %v772 = vsel %vm760, %v754, %v766
        %v773 = vsel %vm761, %v755, %v767
        %v774 = vsel %vm762, %v756, %v768
        %v775 = vsel %vm763, %v757, %v769
        %v776 = vsel %vm764, %v758, %v770
        %v777 = vsel %vm765, %v759, %v771
        %v778 = vadd.f32 %v415, %v772
        %v779 = vadd.f32 %v416, %v773
        %v780 = vadd.f32 %v417, %v774
        %v781 = vadd.f32 %v418, %v775
        %v782 = vadd.f32 %v419, %v776
        %v783 = vadd.f32 %v420, %v777
        %s784 = scalar_lea.vmem %s4, 4
        %v785 = vld [vmem:[%s784] sm:$0xf]
        %792 = vrot.lane.b32.xlu0 %v778, 2
        %v793 = vpop.permute.xlu0 %792
        %794 = vrot.lane.b32.xlu0 %v779, 2
        %v795 = vpop.permute.xlu0 %794
        %796 = vrot.lane.b32.xlu0 %v780, 2
        %v797 = vpop.permute.xlu0 %796
        %798 = vrot.lane.b32.xlu0 %v781, 2
        %v799 = vpop.permute.xlu0 %798
        %800 = vrot.lane.b32.xlu0 %v782, 2
        %v801 = vpop.permute.xlu0 %800
        %802 = vrot.lane.b32.xlu0 %v783, 2
        %v803 = vpop.permute.xlu0 %802
        %vm810 = vcmask 15360
        %v811 = vsel %vm810, 0.0, %v793
        %v812 = vsel %vm810, 0.0, %v795
        %v813 = vsel %vm810, 0.0, %v797
        %v814 = vsel %vm810, 0.0, %v799
        %v815 = vsel %vm810, 0.0, %v801
        %v816 = vsel %vm810, 0.0, %v803
        %v817 = vlaneseq
        %v818 = vshrl.u32 %v817, 7
        %v819 = vsub.s32 2, %v818
        %v820 = vrot.slane %v785, %v819
        %v821 = vmul.f32 %v811, %v820
        %v822 = vmul.f32 %v812, %v820
        %v823 = vmul.f32 %v813, %v820
        %v824 = vmul.f32 %v814, %v820
        %v825 = vmul.f32 %v815, %v820
        %v826 = vmul.f32 %v816, %v820
        %827 = vrot.lane.b32.xlu0 %v778, 126
        %v828 = vpop.permute.xlu0 %827
        %829 = vrot.lane.b32.xlu0 %v779, 126
        %v830 = vpop.permute.xlu0 %829
        %831 = vrot.lane.b32.xlu0 %v780, 126
        %v832 = vpop.permute.xlu0 %831
        %833 = vrot.lane.b32.xlu0 %v781, 126
        %v834 = vpop.permute.xlu0 %833
        %835 = vrot.lane.b32.xlu0 %v782, 126
        %v836 = vpop.permute.xlu0 %835
        %837 = vrot.lane.b32.xlu0 %v783, 126
        %v838 = vpop.permute.xlu0 %837
        %vm845 = vcmask 375808
        %v846 = vsel %vm845, %v828, 0.0
        %v847 = vsel %vm845, %v830, 0.0
        %v848 = vsel %vm845, %v832, 0.0
        %v849 = vsel %vm845, %v834, 0.0
        %v850 = vsel %vm845, %v836, 0.0
        %v851 = vsel %vm845, %v838, 0.0
        %v852 = vlaneseq
        %v853 = vshrl.u32 %v852, 7
        %v854 = vsub.s32 3, %v853
        %v855 = vrot.slane %v785, %v854
        %v856 = vmul.f32 %v846, %v855
        %v857 = vmul.f32 %v847, %v855
        %v858 = vmul.f32 %v848, %v855
        %v859 = vmul.f32 %v849, %v855
        %v860 = vmul.f32 %v850, %v855
        %v861 = vmul.f32 %v851, %v855
        %s862 = scalar_lea.vmem [#allocation2], 96
        %v863 = vld [vmem:[%s862] sm:$0xff]
        %v864 = vld [vmem:[%s862 + $0x8] sm:$0xff]
        %v865 = vld [vmem:[%s862 + $0x10] sm:$0xff]
        %v866 = vld [vmem:[%s862 + $0x18] sm:$0xff]
        %v867 = vld [vmem:[%s862 + $0x20] sm:$0xff]
        %v868 = vld [vmem:[%s862 + $0x28] sm:$0xff]
        %v869 = vld [vmem:[%s862 + $0x30] sm:$0xff]
        %v870 = vld [vmem:[%s862 + $0x38] sm:$0xff]
        %v871 = vld [vmem:[%s862 + $0x40] sm:$0xff]
        %v872 = vld [vmem:[%s862 + $0x48] sm:$0xff]
        %v873 = vld [vmem:[%s862 + $0x50] sm:$0xff]
        %v874 = vld [vmem:[%s862 + $0x58] sm:$0xff]
        %s875 = scalar_lea.vmem %s3, 48
        %v876 = vld [vmem:[%s875] sm:$0xff]
        %v877 = vld [vmem:[%s875 + $0x8] sm:$0xff]
        %v878 = vld [vmem:[%s875 + $0x10] sm:$0xff]
        %v879 = vld [vmem:[%s875 + $0x18] sm:$0xff]
        %v880 = vld [vmem:[%s875 + $0x20] sm:$0xff]
        %v881 = vld [vmem:[%s875 + $0x28] sm:$0xff]
        %883 = vset.pattern.permute.xlu0 0
        %884 = vperm.xlu0 %883, %v876
        %v885 = vpop.permute.xlu0 %884
        %888 = vset.pattern.permute.xlu0 0
        %889 = vperm.xlu0 %888, %v877
        %v890 = vpop.permute.xlu0 %889
        %893 = vset.pattern.permute.xlu0 0
        %894 = vperm.xlu0 %893, %v878
        %v895 = vpop.permute.xlu0 %894
        %898 = vset.pattern.permute.xlu0 0
        %899 = vperm.xlu0 %898, %v879
        %v900 = vpop.permute.xlu0 %899
        %903 = vset.pattern.permute.xlu0 0
        %904 = vperm.xlu0 %903, %v880
        %v905 = vpop.permute.xlu0 %904
        %908 = vset.pattern.permute.xlu0 0
        %909 = vperm.xlu0 %908, %v881
        %v910 = vpop.permute.xlu0 %909
        %v913 = vsel %vm546, %v864, 0
        %v916 = vsel %vm546, %v866, 0
        %v919 = vsel %vm546, %v868, 0
        %v922 = vsel %vm546, %v870, 0
        %v925 = vsel %vm546, %v872, 0
        %v928 = vsel %vm546, %v874, 0
        %930 = vmatprep.subr.mxu0 0.0
        %931 = vmatpush1.msra.mxu0 %v821
        %932 = vmatprep.subr.mxu0 0.0
        %933 = vmatpush1.msra.mxu0 %v822
        %934 = vmatprep.subr.mxu0 0.0
        %935 = vmatpush1.msra.mxu0 %v823
        %936 = vmatprep.subr.mxu0 0.0
        %937 = vmatpush1.msra.mxu0 %v824
        %938 = vmatprep.subr.mxu0 0.0
        %939 = vmatpush1.msra.mxu0 %v825
        %940 = vmatprep.subr.mxu0 0.0
        %941 = vmatpush1.msra.mxu0 %v826
        %942 = vmatprep.subr.mxu0 0.0
        %943 = vmatpush1.msra.mxu0 %v778
        %944 = vmatprep.subr.mxu0 0.0
        %945 = vmatpush1.msra.mxu0 %v779
        %946 = vmatprep.subr.mxu0 0.0
        %947 = vmatpush1.msra.mxu0 %v780
        %948 = vmatprep.subr.mxu0 0.0
        %949 = vmatpush1.msra.mxu0 %v781
        %950 = vmatprep.subr.mxu0 0.0
        %951 = vmatpush1.msra.mxu0 %v782
        %952 = vmatprep.subr.mxu0 0.0
        %953 = vmatpush1.msra.mxu0 %v783
        %954 = vmatprep.subr.mxu0 0.0
        %955 = vmatpush1.msra.mxu0 %v856
        %956 = vmatprep.subr.mxu0 0.0
        %957 = vmatpush1.msra.mxu0 %v857
        %958 = vmatprep.subr.mxu0 0.0
        %959 = vmatpush1.msra.mxu0 %v858
        %960 = vmatprep.subr.mxu0 0.0
        %961 = vmatpush1.msra.mxu0 %v859
        %962 = vmatprep.subr.mxu0 0.0
        %963 = vmatpush1.msra.mxu0 %v860
        %964 = vmatprep.subr.mxu0 0.0
        %965 = vmatpush1.msra.mxu0 %v861
        %966 = vmatprep.subr.mxu0 0.0
        %967 = vmatpush1.msra.mxu0 0.0
        %968 = vmatprep.subr.mxu0 0.0
        %969 = vmatpush1.msra.mxu0 0.0
        %970 = vmatprep.subr.mxu0 0.0
        %971 = vmatpush1.msra.mxu0 0.0
        %972 = vmatprep.subr.mxu0 0.0
        %973 = vmatpush1.msra.mxu0 0.0
        %974 = vmatprep.subr.mxu0 0.0
        %975 = vmatpush1.msra.mxu0 0.0
        %976 = vmatprep.subr.mxu0 0.0
        %977 = vmatpush1.msra.mxu0 0.0
        %978 = vmatprep.subr.mxu0 0.0
        %979 = vmatpush1.msra.mxu0 0.0
        %980 = vmatprep.subr.mxu0 0.0
        %981 = vmatpush1.msra.mxu0 0.0
        %982 = vmatprep.subr.mxu0 0.0
        %983 = vmatpush1.msra.mxu0 0.0
        %984 = vmatprep.subr.mxu0 0.0
        %985 = vmatpush1.msra.mxu0 0.0
        %986 = vmatprep.subr.mxu0 0.0
        %987 = vmatpush1.msra.mxu0 0.0
        %988 = vmatprep.subr.mxu0 0.0
        %989 = vmatpush1.msra.mxu0 0.0
        %990 = vmatprep.subr.mxu0 0.0
        %991 = vmatpush1.msra.mxu0 0.0
        %992 = vmatprep.subr.mxu0 0.0
        %993 = vmatpush1.msra.mxu0 0.0
        %994 = vmatprep.mubr.f32.mxu0 %v913
        %995 = vmatmul.mubr.f32.gmra.mrb[0].mxu0 %v863
        %v996 = vpop.f32.mrb[0].mxu0
        %v997 = vadd.f32 %v885, %v996
        %v998 = vpop.f32.mrb[0].mxu0
        %999 = vmatprep.mubr.f32.mxu0 %v916
        %1000 = vmatmul.mubr.f32.gmra.mrb[0].mxu0 %v865
        %v1001 = vpop.f32.mrb[0].mxu0
        %v1002 = vadd.f32 %v890, %v1001
        %v1003 = vpop.f32.mrb[0].mxu0
        %1004 = vmatprep.mubr.f32.mxu0 %v919
        %1005 = vmatmul.mubr.f32.gmra.mrb[0].mxu0 %v867
        %v1006 = vpop.f32.mrb[0].mxu0
        %v1007 = vadd.f32 %v895, %v1006
        %v1008 = vpop.f32.mrb[0].mxu0
        %1009 = vmatprep.mubr.f32.mxu0 %v922
        %1010 = vmatmul.mubr.f32.gmra.mrb[0].mxu0 %v869
        %v1011 = vpop.f32.mrb[0].mxu0
        %v1012 = vadd.f32 %v900, %v1011
        %v1013 = vpop.f32.mrb[0].mxu0
        %1014 = vmatprep.mubr.f32.mxu0 %v925
        %1015 = vmatmul.mubr.f32.gmra.mrb[0].mxu0 %v871
        %v1016 = vpop.f32.mrb[0].mxu0
        %v1017 = vadd.f32 %v905, %v1016
        %v1018 = vpop.f32.mrb[0].mxu0
        %1019 = vmatprep.mubr.f32.mxu0 %v928
        %1020 = vmatmul.mubr.f32.gmra.mrb[0].mxu0 %v873
        %v1021 = vpop.f32.mrb[0].mxu0
        %v1022 = vadd.f32 %v910, %v1021
        %v1023 = vpop.f32.mrb[0].mxu0
        %1024 = vdwg.mxu0
        %v1025 = vsel %vm660, %v997, 0.0
        %1026 = vadd.xlane.f32.xlu0 %v1025
        %v1027 = vpop.xlane.xlu0 %1026
        %v1028 = vsel %vm660, %v1002, 0.0
        %1029 = vadd.xlane.f32.xlu0 %v1028
        %v1030 = vpop.xlane.xlu0 %1029
        %v1031 = vsel %vm660, %v1007, 0.0
        %1032 = vadd.xlane.f32.xlu0 %v1031
        %v1033 = vpop.xlane.xlu0 %1032
        %v1034 = vsel %vm660, %v1012, 0.0
        %1035 = vadd.xlane.f32.xlu0 %v1034
        %v1036 = vpop.xlane.xlu0 %1035
        %v1037 = vsel %vm660, %v1017, 0.0
        %1038 = vadd.xlane.f32.xlu0 %v1037
        %v1039 = vpop.xlane.xlu0 %1038
        %v1040 = vsel %vm660, %v1022, 0.0
        %1041 = vadd.xlane.f32.xlu0 %v1040
        %v1042 = vpop.xlane.xlu0 %1041
        %v1043 = vmul.f32 %v1027, %v679
        %v1044 = vmul.f32 %v1030, %v679
        %v1045 = vmul.f32 %v1033, %v679
        %v1046 = vmul.f32 %v1036, %v679
        %v1047 = vmul.f32 %v1039, %v679
        %v1048 = vmul.f32 %v1042, %v679
        %v1049 = vsub.f32 %v997, %v1043
        %v1050 = vsub.f32 %v1002, %v1044
        %v1051 = vsub.f32 %v1007, %v1045
        %v1052 = vsub.f32 %v1012, %v1046
        %v1053 = vsub.f32 %v1017, %v1047
        %v1054 = vsub.f32 %v1022, %v1048
        %v1055 = vmul.f32 %v1049, %v1049
        %v1056 = vmul.f32 %v1050, %v1050
        %v1057 = vmul.f32 %v1051, %v1051
        %v1058 = vmul.f32 %v1052, %v1052
        %v1059 = vmul.f32 %v1053, %v1053
        %v1060 = vmul.f32 %v1054, %v1054
        %v1061 = vsel %vm660, %v1055, 0.0
        %1062 = vadd.xlane.f32.xlu0 %v1061
        %v1063 = vpop.xlane.xlu0 %1062
        %v1064 = vsel %vm660, %v1056, 0.0
        %1065 = vadd.xlane.f32.xlu0 %v1064
        %v1066 = vpop.xlane.xlu0 %1065
        %v1067 = vsel %vm660, %v1057, 0.0
        %1068 = vadd.xlane.f32.xlu0 %v1067
        %v1069 = vpop.xlane.xlu0 %1068
        %v1070 = vsel %vm660, %v1058, 0.0
        %1071 = vadd.xlane.f32.xlu0 %v1070
        %v1072 = vpop.xlane.xlu0 %1071
        %v1073 = vsel %vm660, %v1059, 0.0
        %1074 = vadd.xlane.f32.xlu0 %v1073
        %v1075 = vpop.xlane.xlu0 %1074
        %v1076 = vsel %vm660, %v1060, 0.0
        %1077 = vadd.xlane.f32.xlu0 %v1076
        %v1078 = vpop.xlane.xlu0 %1077
        %v1079 = vmul.f32 %v1063, %v679
        %v1080 = vmul.f32 %v1066, %v679
        %v1081 = vmul.f32 %v1069, %v679
        %v1082 = vmul.f32 %v1072, %v679
        %v1083 = vmul.f32 %v1075, %v679
        %v1084 = vmul.f32 %v1078, %v679
        %v1085 = vadd.f32 %v1079, 1e-05
        %v1086 = vadd.f32 %v1080, 1e-05
        %v1087 = vadd.f32 %v1081, 1e-05
        %v1088 = vadd.f32 %v1082, 1e-05
        %v1089 = vadd.f32 %v1083, 1e-05
        %v1090 = vadd.f32 %v1084, 1e-05
        %v1091 = vrsqrt.pop %v1085
        %v1092 = vrsqrt.pop %v1086
        %v1093 = vrsqrt.pop %v1087
        %v1094 = vrsqrt.pop %v1088
        %v1095 = vrsqrt.pop %v1089
        %v1096 = vrsqrt.pop %v1090
        %v1097 = vmul.f32 %v1049, %v1091
        %v1098 = vmul.f32 %v1050, %v1092
        %v1099 = vmul.f32 %v1051, %v1093
        %v1100 = vmul.f32 %v1052, %v1094
        %v1101 = vmul.f32 %v1053, %v1095
        %v1102 = vmul.f32 %v1054, %v1096
        %v1103 = vlaneseq
        %v1104 = vshrl.u32 %v1103, 7
        %v1105 = vsub.s32 0, %v1104
        %v1106 = vrot.slane %v785, %v1105
        %v1107 = vmul.f32 %v1097, %v1106
        %v1108 = vmul.f32 %v1098, %v1106
        %v1109 = vmul.f32 %v1099, %v1106
        %v1110 = vmul.f32 %v1100, %v1106
        %v1111 = vmul.f32 %v1101, %v1106
        %v1112 = vmul.f32 %v1102, %v1106
        %v1113 = vlaneseq
        %v1114 = vshrl.u32 %v1113, 7
        %v1115 = vsub.s32 1, %v1114
        %v1116 = vrot.slane %v785, %v1115
        %v1117 = vadd.f32 %v1107, %v1116
        %v1118 = vadd.f32 %v1108, %v1116
        %v1119 = vadd.f32 %v1109, %v1116
        %v1120 = vadd.f32 %v1110, %v1116
        %v1121 = vadd.f32 %v1111, %v1116
        %v1122 = vadd.f32 %v1112, %v1116
        %vm1123 = vcmp.gt.f32.partialorder %v1117, 0.0
        %vm1124 = vcmp.gt.f32.partialorder %v1118, 0.0
        %vm1125 = vcmp.gt.f32.partialorder %v1119, 0.0
        %vm1126 = vcmp.gt.f32.partialorder %v1120, 0.0
        %vm1127 = vcmp.gt.f32.partialorder %v1121, 0.0
        %vm1128 = vcmp.gt.f32.partialorder %v1122, 0.0
        %v1129 = vmul.f32 %v1117, 0.2
        %v1130 = vmul.f32 %v1118, 0.2
        %v1131 = vmul.f32 %v1119, 0.2
        %v1132 = vmul.f32 %v1120, 0.2
        %v1133 = vmul.f32 %v1121, 0.2
        %v1134 = vmul.f32 %v1122, 0.2
        %v1135 = vsel %vm1123, %v1117, %v1129
        %v1136 = vsel %vm1124, %v1118, %v1130
        %v1137 = vsel %vm1125, %v1119, %v1131
        %v1138 = vsel %vm1126, %v1120, %v1132
        %v1139 = vsel %vm1127, %v1121, %v1133
        %v1140 = vsel %vm1128, %v1122, %v1134
        %v1141 = vadd.f32 %v778, %v1135
        %v1142 = vadd.f32 %v779, %v1136
        %v1143 = vadd.f32 %v780, %v1137
        %v1144 = vadd.f32 %v781, %v1138
        %v1145 = vadd.f32 %v782, %v1139
        %v1146 = vadd.f32 %v783, %v1140
        %s1147 = scalar_lea.vmem %s4, 8
        %v1148 = vld [vmem:[%s1147] sm:$0xf]
        %1155 = vrot.lane.b32.xlu0 %v1141, 4
        %v1156 = vpop.permute.xlu0 %1155
        %1157 = vrot.lane.b32.xlu0 %v1142, 4
        %v1158 = vpop.permute.xlu0 %1157
        %1159 = vrot.lane.b32.xlu0 %v1143, 4
        %v1160 = vpop.permute.xlu0 %1159
        %1161 = vrot.lane.b32.xlu0 %v1144, 4
        %v1162 = vpop.permute.xlu0 %1161
        %1163 = vrot.lane.b32.xlu0 %v1145, 4
        %v1164 = vpop.permute.xlu0 %1163
        %1165 = vrot.lane.b32.xlu0 %v1146, 4
        %v1166 = vpop.permute.xlu0 %1165
        %vm1173 = vcmask 31744
        %v1174 = vsel %vm1173, 0.0, %v1156
        %v1175 = vsel %vm1173, 0.0, %v1158
        %v1176 = vsel %vm1173, 0.0, %v1160
        %v1177 = vsel %vm1173, 0.0, %v1162
        %v1178 = vsel %vm1173, 0.0, %v1164
        %v1179 = vsel %vm1173, 0.0, %v1166
        %v1180 = vlaneseq
        %v1181 = vshrl.u32 %v1180, 7
        %v1182 = vsub.s32 2, %v1181
        %v1183 = vrot.slane %v1148, %v1182
        %v1184 = vmul.f32 %v1174, %v1183
        %v1185 = vmul.f32 %v1175, %v1183
        %v1186 = vmul.f32 %v1176, %v1183
        %v1187 = vmul.f32 %v1177, %v1183
        %v1188 = vmul.f32 %v1178, %v1183
        %v1189 = vmul.f32 %v1179, %v1183
        %1190 = vrot.lane.b32.xlu0 %v1141, 124
        %v1191 = vpop.permute.xlu0 %1190
        %1192 = vrot.lane.b32.xlu0 %v1142, 124
        %v1193 = vpop.permute.xlu0 %1192
        %1194 = vrot.lane.b32.xlu0 %v1143, 124
        %v1195 = vpop.permute.xlu0 %1194
        %1196 = vrot.lane.b32.xlu0 %v1144, 124
        %v1197 = vpop.permute.xlu0 %1196
        %1198 = vrot.lane.b32.xlu0 %v1145, 124
        %v1199 = vpop.permute.xlu0 %1198
        %1200 = vrot.lane.b32.xlu0 %v1146, 124
        %v1201 = vpop.permute.xlu0 %1200
        %vm1208 = vcmask 359424
        %v1209 = vsel %vm1208, %v1191, 0.0
        %v1210 = vsel %vm1208, %v1193, 0.0
        %v1211 = vsel %vm1208, %v1195, 0.0
        %v1212 = vsel %vm1208, %v1197, 0.0
        %v1213 = vsel %vm1208, %v1199, 0.0
        %v1214 = vsel %vm1208, %v1201, 0.0
        %v1215 = vlaneseq
        %v1216 = vshrl.u32 %v1215, 7
        %v1217 = vsub.s32 3, %v1216
        %v1218 = vrot.slane %v1148, %v1217
        %v1219 = vmul.f32 %v1209, %v1218
        %v1220 = vmul.f32 %v1210, %v1218
        %v1221 = vmul.f32 %v1211, %v1218
        %v1222 = vmul.f32 %v1212, %v1218
        %v1223 = vmul.f32 %v1213, %v1218
        %v1224 = vmul.f32 %v1214, %v1218
        %s1225 = scalar_lea.vmem [#allocation2], 192
        %v1226 = vld [vmem:[%s1225] sm:$0xff]
        %v1227 = vld [vmem:[%s1225 + $0x8] sm:$0xff]
        %v1228 = vld [vmem:[%s1225 + $0x10] sm:$0xff]
        %v1229 = vld [vmem:[%s1225 + $0x18] sm:$0xff]
        %v1230 = vld [vmem:[%s1225 + $0x20] sm:$0xff]
        %v1231 = vld [vmem:[%s1225 + $0x28] sm:$0xff]
        %v1232 = vld [vmem:[%s1225 + $0x30] sm:$0xff]
        %v1233 = vld [vmem:[%s1225 + $0x38] sm:$0xff]
        %v1234 = vld [vmem:[%s1225 + $0x40] sm:$0xff]
        %v1235 = vld [vmem:[%s1225 + $0x48] sm:$0xff]
        %v1236 = vld [vmem:[%s1225 + $0x50] sm:$0xff]
        %v1237 = vld [vmem:[%s1225 + $0x58] sm:$0xff]
        %s1238 = scalar_lea.vmem %s3, 96
        %v1239 = vld [vmem:[%s1238] sm:$0xff]
        %v1240 = vld [vmem:[%s1238 + $0x8] sm:$0xff]
        %v1241 = vld [vmem:[%s1238 + $0x10] sm:$0xff]
        %v1242 = vld [vmem:[%s1238 + $0x18] sm:$0xff]
        %v1243 = vld [vmem:[%s1238 + $0x20] sm:$0xff]
        %v1244 = vld [vmem:[%s1238 + $0x28] sm:$0xff]
        %1246 = vset.pattern.permute.xlu0 0
        %1247 = vperm.xlu0 %1246, %v1239
        %v1248 = vpop.permute.xlu0 %1247
        %1251 = vset.pattern.permute.xlu0 0
        %1252 = vperm.xlu0 %1251, %v1240
        %v1253 = vpop.permute.xlu0 %1252
        %1256 = vset.pattern.permute.xlu0 0
        %1257 = vperm.xlu0 %1256, %v1241
        %v1258 = vpop.permute.xlu0 %1257
        %1261 = vset.pattern.permute.xlu0 0
        %1262 = vperm.xlu0 %1261, %v1242
        %v1263 = vpop.permute.xlu0 %1262
        %1266 = vset.pattern.permute.xlu0 0
        %1267 = vperm.xlu0 %1266, %v1243
        %v1268 = vpop.permute.xlu0 %1267
        %1271 = vset.pattern.permute.xlu0 0
        %1272 = vperm.xlu0 %1271, %v1244
        %v1273 = vpop.permute.xlu0 %1272
        %v1276 = vsel %vm546, %v1227, 0
        %v1279 = vsel %vm546, %v1229, 0
        %v1282 = vsel %vm546, %v1231, 0
        %v1285 = vsel %vm546, %v1233, 0
        %v1288 = vsel %vm546, %v1235, 0
        %v1291 = vsel %vm546, %v1237, 0
        %1293 = vmatprep.subr.mxu0 0.0
        %1294 = vmatpush1.msra.mxu0 %v1184
        %1295 = vmatprep.subr.mxu0 0.0
        %1296 = vmatpush1.msra.mxu0 %v1185
        %1297 = vmatprep.subr.mxu0 0.0
        %1298 = vmatpush1.msra.mxu0 %v1186
        %1299 = vmatprep.subr.mxu0 0.0
        %1300 = vmatpush1.msra.mxu0 %v1187
        %1301 = vmatprep.subr.mxu0 0.0
        %1302 = vmatpush1.msra.mxu0 %v1188
        %1303 = vmatprep.subr.mxu0 0.0
        %1304 = vmatpush1.msra.mxu0 %v1189
        %1305 = vmatprep.subr.mxu0 0.0
        %1306 = vmatpush1.msra.mxu0 %v1141
        %1307 = vmatprep.subr.mxu0 0.0
        %1308 = vmatpush1.msra.mxu0 %v1142
        %1309 = vmatprep.subr.mxu0 0.0
        %1310 = vmatpush1.msra.mxu0 %v1143
        %1311 = vmatprep.subr.mxu0 0.0
        %1312 = vmatpush1.msra.mxu0 %v1144
        %1313 = vmatprep.subr.mxu0 0.0
        %1314 = vmatpush1.msra.mxu0 %v1145
        %1315 = vmatprep.subr.mxu0 0.0
        %1316 = vmatpush1.msra.mxu0 %v1146
        %1317 = vmatprep.subr.mxu0 0.0
        %1318 = vmatpush1.msra.mxu0 %v1219
        %1319 = vmatprep.subr.mxu0 0.0
        %1320 = vmatpush1.msra.mxu0 %v1220
        %1321 = vmatprep.subr.mxu0 0.0
        %1322 = vmatpush1.msra.mxu0 %v1221
        %1323 = vmatprep.subr.mxu0 0.0
        %1324 = vmatpush1.msra.mxu0 %v1222
        %1325 = vmatprep.subr.mxu0 0.0
        %1326 = vmatpush1.msra.mxu0 %v1223
        %1327 = vmatprep.subr.mxu0 0.0
        %1328 = vmatpush1.msra.mxu0 %v1224
        %1329 = vmatprep.subr.mxu0 0.0
        %1330 = vmatpush1.msra.mxu0 0.0
        %1331 = vmatprep.subr.mxu0 0.0
        %1332 = vmatpush1.msra.mxu0 0.0
        %1333 = vmatprep.subr.mxu0 0.0
        %1334 = vmatpush1.msra.mxu0 0.0
        %1335 = vmatprep.subr.mxu0 0.0
        %1336 = vmatpush1.msra.mxu0 0.0
        %1337 = vmatprep.subr.mxu0 0.0
        %1338 = vmatpush1.msra.mxu0 0.0
        %1339 = vmatprep.subr.mxu0 0.0
        %1340 = vmatpush1.msra.mxu0 0.0
        %1341 = vmatprep.subr.mxu0 0.0
        %1342 = vmatpush1.msra.mxu0 0.0
        %1343 = vmatprep.subr.mxu0 0.0
        %1344 = vmatpush1.msra.mxu0 0.0
        %1345 = vmatprep.subr.mxu0 0.0
        %1346 = vmatpush1.msra.mxu0 0.0
        %1347 = vmatprep.subr.mxu0 0.0
        %1348 = vmatpush1.msra.mxu0 0.0
        %1349 = vmatprep.subr.mxu0 0.0
        %1350 = vmatpush1.msra.mxu0 0.0
        %1351 = vmatprep.subr.mxu0 0.0
        %1352 = vmatpush1.msra.mxu0 0.0
        %1353 = vmatprep.subr.mxu0 0.0
        %1354 = vmatpush1.msra.mxu0 0.0
        %1355 = vmatprep.subr.mxu0 0.0
        %1356 = vmatpush1.msra.mxu0 0.0
        %1357 = vmatprep.mubr.f32.mxu0 %v1276
        %1358 = vmatmul.mubr.f32.gmra.mrb[0].mxu0 %v1226
        %v1359 = vpop.f32.mrb[0].mxu0
        %v1360 = vadd.f32 %v1248, %v1359
        %v1361 = vpop.f32.mrb[0].mxu0
        %1362 = vmatprep.mubr.f32.mxu0 %v1279
        %1363 = vmatmul.mubr.f32.gmra.mrb[0].mxu0 %v1228
        %v1364 = vpop.f32.mrb[0].mxu0
        %v1365 = vadd.f32 %v1253, %v1364
        %v1366 = vpop.f32.mrb[0].mxu0
        %1367 = vmatprep.mubr.f32.mxu0 %v1282
        %1368 = vmatmul.mubr.f32.gmra.mrb[0].mxu0 %v1230
        %v1369 = vpop.f32.mrb[0].mxu0
        %v1370 = vadd.f32 %v1258, %v1369
        %v1371 = vpop.f32.mrb[0].mxu0
        %1372 = vmatprep.mubr.f32.mxu0 %v1285
        %1373 = vmatmul.mubr.f32.gmra.mrb[0].mxu0 %v1232
        %v1374 = vpop.f32.mrb[0].mxu0
        %v1375 = vadd.f32 %v1263, %v1374
        %v1376 = vpop.f32.mrb[0].mxu0
        %1377 = vmatprep.mubr.f32.mxu0 %v1288
        %1378 = vmatmul.mubr.f32.gmra.mrb[0].mxu0 %v1234
        %v1379 = vpop.f32.mrb[0].mxu0
        %v1380 = vadd.f32 %v1268, %v1379
        %v1381 = vpop.f32.mrb[0].mxu0
        %1382 = vmatprep.mubr.f32.mxu0 %v1291
        %1383 = vmatmul.mubr.f32.gmra.mrb[0].mxu0 %v1236
        %v1384 = vpop.f32.mrb[0].mxu0
        %v1385 = vadd.f32 %v1273, %v1384
        %v1386 = vpop.f32.mrb[0].mxu0
        %1387 = vdwg.mxu0
        %v1388 = vsel %vm660, %v1360, 0.0
        %1389 = vadd.xlane.f32.xlu0 %v1388
        %v1390 = vpop.xlane.xlu0 %1389
        %v1391 = vsel %vm660, %v1365, 0.0
        %1392 = vadd.xlane.f32.xlu0 %v1391
        %v1393 = vpop.xlane.xlu0 %1392
        %v1394 = vsel %vm660, %v1370, 0.0
        %1395 = vadd.xlane.f32.xlu0 %v1394
        %v1396 = vpop.xlane.xlu0 %1395
        %v1397 = vsel %vm660, %v1375, 0.0
        %1398 = vadd.xlane.f32.xlu0 %v1397
        %v1399 = vpop.xlane.xlu0 %1398
        %v1400 = vsel %vm660, %v1380, 0.0
        %1401 = vadd.xlane.f32.xlu0 %v1400
        %v1402 = vpop.xlane.xlu0 %1401
        %v1403 = vsel %vm660, %v1385, 0.0
        %1404 = vadd.xlane.f32.xlu0 %v1403
        %v1405 = vpop.xlane.xlu0 %1404
        %v1406 = vmul.f32 %v1390, %v679
        %v1407 = vmul.f32 %v1393, %v679
        %v1408 = vmul.f32 %v1396, %v679
        %v1409 = vmul.f32 %v1399, %v679
        %v1410 = vmul.f32 %v1402, %v679
        %v1411 = vmul.f32 %v1405, %v679
        %v1412 = vsub.f32 %v1360, %v1406
        %v1413 = vsub.f32 %v1365, %v1407
        %v1414 = vsub.f32 %v1370, %v1408
        %v1415 = vsub.f32 %v1375, %v1409
        %v1416 = vsub.f32 %v1380, %v1410
        %v1417 = vsub.f32 %v1385, %v1411
        %v1418 = vmul.f32 %v1412, %v1412
        %v1419 = vmul.f32 %v1413, %v1413
        %v1420 = vmul.f32 %v1414, %v1414
        %v1421 = vmul.f32 %v1415, %v1415
        %v1422 = vmul.f32 %v1416, %v1416
        %v1423 = vmul.f32 %v1417, %v1417
        %v1424 = vsel %vm660, %v1418, 0.0
        %1425 = vadd.xlane.f32.xlu0 %v1424
        %v1426 = vpop.xlane.xlu0 %1425
        %v1427 = vsel %vm660, %v1419, 0.0
        %1428 = vadd.xlane.f32.xlu0 %v1427
        %v1429 = vpop.xlane.xlu0 %1428
        %v1430 = vsel %vm660, %v1420, 0.0
        %1431 = vadd.xlane.f32.xlu0 %v1430
        %v1432 = vpop.xlane.xlu0 %1431
        %v1433 = vsel %vm660, %v1421, 0.0
        %1434 = vadd.xlane.f32.xlu0 %v1433
        %v1435 = vpop.xlane.xlu0 %1434
        %v1436 = vsel %vm660, %v1422, 0.0
        %1437 = vadd.xlane.f32.xlu0 %v1436
        %v1438 = vpop.xlane.xlu0 %1437
        %v1439 = vsel %vm660, %v1423, 0.0
        %1440 = vadd.xlane.f32.xlu0 %v1439
        %v1441 = vpop.xlane.xlu0 %1440
        %v1442 = vmul.f32 %v1426, %v679
        %v1443 = vmul.f32 %v1429, %v679
        %v1444 = vmul.f32 %v1432, %v679
        %v1445 = vmul.f32 %v1435, %v679
        %v1446 = vmul.f32 %v1438, %v679
        %v1447 = vmul.f32 %v1441, %v679
        %v1448 = vadd.f32 %v1442, 1e-05
        %v1449 = vadd.f32 %v1443, 1e-05
        %v1450 = vadd.f32 %v1444, 1e-05
        %v1451 = vadd.f32 %v1445, 1e-05
        %v1452 = vadd.f32 %v1446, 1e-05
        %v1453 = vadd.f32 %v1447, 1e-05
        %v1454 = vrsqrt.pop %v1448
        %v1455 = vrsqrt.pop %v1449
        %v1456 = vrsqrt.pop %v1450
        %v1457 = vrsqrt.pop %v1451
        %v1458 = vrsqrt.pop %v1452
        %v1459 = vrsqrt.pop %v1453
        %v1460 = vmul.f32 %v1412, %v1454
        %v1461 = vmul.f32 %v1413, %v1455
        %v1462 = vmul.f32 %v1414, %v1456
        %v1463 = vmul.f32 %v1415, %v1457
        %v1464 = vmul.f32 %v1416, %v1458
        %v1465 = vmul.f32 %v1417, %v1459
        %v1466 = vlaneseq
        %v1467 = vshrl.u32 %v1466, 7
        %v1468 = vsub.s32 0, %v1467
        %v1469 = vrot.slane %v1148, %v1468
        %v1470 = vmul.f32 %v1460, %v1469
        %v1471 = vmul.f32 %v1461, %v1469
        %v1472 = vmul.f32 %v1462, %v1469
        %v1473 = vmul.f32 %v1463, %v1469
        %v1474 = vmul.f32 %v1464, %v1469
        %v1475 = vmul.f32 %v1465, %v1469
        %v1476 = vlaneseq
        %v1477 = vshrl.u32 %v1476, 7
        %v1478 = vsub.s32 1, %v1477
        %v1479 = vrot.slane %v1148, %v1478
        %v1480 = vadd.f32 %v1470, %v1479
        %v1481 = vadd.f32 %v1471, %v1479
        %v1482 = vadd.f32 %v1472, %v1479
        %v1483 = vadd.f32 %v1473, %v1479
        %v1484 = vadd.f32 %v1474, %v1479
        %v1485 = vadd.f32 %v1475, %v1479
        %vm1486 = vcmp.gt.f32.partialorder %v1480, 0.0
        %vm1487 = vcmp.gt.f32.partialorder %v1481, 0.0
        %vm1488 = vcmp.gt.f32.partialorder %v1482, 0.0
        %vm1489 = vcmp.gt.f32.partialorder %v1483, 0.0
        %vm1490 = vcmp.gt.f32.partialorder %v1484, 0.0
        %vm1491 = vcmp.gt.f32.partialorder %v1485, 0.0
        %v1492 = vmul.f32 %v1480, 0.2
        %v1493 = vmul.f32 %v1481, 0.2
        %v1494 = vmul.f32 %v1482, 0.2
        %v1495 = vmul.f32 %v1483, 0.2
        %v1496 = vmul.f32 %v1484, 0.2
        %v1497 = vmul.f32 %v1485, 0.2
        %v1498 = vsel %vm1486, %v1480, %v1492
        %v1499 = vsel %vm1487, %v1481, %v1493
        %v1500 = vsel %vm1488, %v1482, %v1494
        %v1501 = vsel %vm1489, %v1483, %v1495
        %v1502 = vsel %vm1490, %v1484, %v1496
        %v1503 = vsel %vm1491, %v1485, %v1497
        %v1504 = vadd.f32 %v1141, %v1498
        %v1505 = vadd.f32 %v1142, %v1499
        %v1506 = vadd.f32 %v1143, %v1500
        %v1507 = vadd.f32 %v1144, %v1501
        %v1508 = vadd.f32 %v1145, %v1502
        %v1509 = vadd.f32 %v1146, %v1503
        %v1510 = vld [vmem:[%s5] sm:$0xff]
        %v1511 = vld [vmem:[%s5 + $0x8] sm:$0xff]
        %v1512 = vld [vmem:[%s5 + $0x10] sm:$0x3]
        %1514 = vset.pattern.permute.xlu0 48
        %1515 = vperm.xlu0 %1514, %v1510
        %v1516 = vpop.permute.xlu0 %1515
        %1519 = vset.pattern.permute.xlu0 48
        %1520 = vperm.xlu0 %1519, %v1511
        %v1521 = vpop.permute.xlu0 %1520
        %1524 = vset.pattern.permute.xlu0 48
        %1525 = vperm.xlu0 %1524, %v1512
        %v1526 = vpop.permute.xlu0 %1525
        %v1528 = vsel %vm660, %v1510, 0
        %v1530 = vsel %vm660, %v1511, 0
        %v1532 = vsel %vm660, %v1512, 0
        %1534 = vmatprep.subr.mxu0 0.0
        %1535 = vmatpush1.msra.mxu0 %v1504
        %1536 = vmatprep.subr.mxu0 0.0
        %1537 = vmatpush1.msra.mxu0 %v1505
        %1538 = vmatprep.subr.mxu0 0.0
        %1539 = vmatpush1.msra.mxu0 %v1506
        %1540 = vmatprep.subr.mxu0 0.0
        %1541 = vmatpush1.msra.mxu0 %v1507
        %1542 = vmatprep.subr.mxu0 0.0
        %1543 = vmatpush1.msra.mxu0 %v1508
        %1544 = vmatprep.subr.mxu0 0.0
        %1545 = vmatpush1.msra.mxu0 %v1509
        %1546 = vmatprep.subr.mxu0 0.0
        %1547 = vmatpush1.msra.mxu0 0.0
        %1548 = vmatprep.subr.mxu0 0.0
        %1549 = vmatpush1.msra.mxu0 0.0
        %1550 = vmatprep.subr.mxu0 0.0
        %1551 = vmatpush1.msra.mxu0 0.0
        %1552 = vmatprep.subr.mxu0 0.0
        %1553 = vmatpush1.msra.mxu0 0.0
        %1554 = vmatprep.subr.mxu0 0.0
        %1555 = vmatpush1.msra.mxu0 0.0
        %1556 = vmatprep.subr.mxu0 0.0
        %1557 = vmatpush1.msra.mxu0 0.0
        %1558 = vmatprep.subr.mxu0 0.0
        %1559 = vmatpush1.msra.mxu0 0.0
        %1560 = vmatprep.subr.mxu0 0.0
        %1561 = vmatpush1.msra.mxu0 0.0
        %1562 = vmatprep.subr.mxu0 0.0
        %1563 = vmatpush1.msra.mxu0 0.0
        %1564 = vmatprep.subr.mxu0 0.0
        %1565 = vmatpush1.msra.mxu0 0.0
        %1566 = vmatprep.subr.mxu0 0.0
        %1567 = vmatpush1.msra.mxu0 0.0
        %1568 = vmatprep.subr.mxu0 0.0
        %1569 = vmatpush1.msra.mxu0 0.0
        %1570 = vmatprep.subr.mxu0 0.0
        %1571 = vmatpush1.msra.mxu0 0.0
        %1572 = vmatprep.subr.mxu0 0.0
        %1573 = vmatpush1.msra.mxu0 0.0
        %1574 = vmatprep.subr.mxu0 0.0
        %1575 = vmatpush1.msra.mxu0 0.0
        %1576 = vmatprep.subr.mxu0 0.0
        %1577 = vmatpush1.msra.mxu0 0.0
        %1578 = vmatprep.subr.mxu0 0.0
        %1579 = vmatpush1.msra.mxu0 0.0
        %1580 = vmatprep.subr.mxu0 0.0
        %1581 = vmatpush1.msra.mxu0 0.0
        %1582 = vmatprep.subr.mxu0 0.0
        %1583 = vmatpush1.msra.mxu0 0.0
        %1584 = vmatprep.subr.mxu0 0.0
        %1585 = vmatpush1.msra.mxu0 0.0
        %1586 = vmatprep.subr.mxu0 0.0
        %1587 = vmatpush1.msra.mxu0 0.0
        %1588 = vmatprep.subr.mxu0 0.0
        %1589 = vmatpush1.msra.mxu0 0.0
        %1590 = vmatprep.subr.mxu0 0.0
        %1591 = vmatpush1.msra.mxu0 0.0
        %1592 = vmatprep.subr.mxu0 0.0
        %1593 = vmatpush1.msra.mxu0 0.0
        %1594 = vmatprep.subr.mxu0 0.0
        %1595 = vmatpush1.msra.mxu0 0.0
        %1596 = vmatprep.subr.mxu0 0.0
        %1597 = vmatpush1.msra.mxu0 0.0
        %1598 = vmatprep.mubr.f32.mxu0 0.0
        %1599 = vmatmul.mubr.f32.gmra.mrb[0].mxu0 %v1528
        %v1600 = vpop.f32.mrb[0].mxu0
        %v1601 = vadd.f32 %v1516, %v1600
        %v1602 = vpop.f32.mrb[0].mxu0
        %1603 = vmatprep.mubr.f32.mxu0 0.0
        %1604 = vmatmul.mubr.f32.gmra.mrb[0].mxu0 %v1530
        %v1605 = vpop.f32.mrb[0].mxu0
        %v1606 = vadd.f32 %v1521, %v1605
        %v1607 = vpop.f32.mrb[0].mxu0
        %1608 = vmatprep.mubr.f32.mxu0 0.0
        %1609 = vmatmul.mubr.f32.gmra.mrb[0].mxu0 %v1532
        %v1610 = vpop.f32.mrb[0].mxu0
        %v1611 = vadd.f32 %v1526, %v1610
        %v1612 = vpop.f32.mrb[0].mxu0
        %1613 = vdwg.mxu0
        %vm1614 = vcmp.gt.f32.partialorder %v1601, 20.0
        %vm1615 = vcmp.gt.f32.partialorder %v1606, 20.0
        %vm1616 = vcmp.gt.f32.partialorder %v1611, 20.0
        %v1617 = vmin.f32 %v1601, 20.0
        %v1618 = vmin.f32 %v1606, 20.0
        %v1619 = vmin.f32 %v1611, 20.0
        %v1620 = vmul.f32 %v1617, 1.442695
        %v1621 = vpow.pop %v1620
        %v1622 = vmul.f32 %v1618, 1.442695
        %v1623 = vpow.pop %v1622
        %v1624 = vmul.f32 %v1619, 1.442695
        %v1625 = vpow.pop %v1624
        %v1626 = vadd.f32 %v1621, 1.0
        %v1627 = vlog2.pop %v1626
        %v1628 = vmul.f32 %v1627, 0.6931472
        %v1629 = vmul.f32 -0.5, %v1621
        %v1630 = vadd.f32 %v1629, 1.0
        %v1631 = vmul.f32 %v1630, %v1621
        %v1632 = vand.u32 2147483647, %v1621
        %vm1633 = vcmp.lt.f32.partialorder %v1632, 0.0004427343
        %v1634 = vsel %vm1633, %v1631, %v1628
        %v1635 = vadd.f32 %v1623, 1.0
        %v1636 = vlog2.pop %v1635
        %v1637 = vmul.f32 %v1636, 0.6931472
        %v1638 = vmul.f32 -0.5, %v1623
        %v1639 = vadd.f32 %v1638, 1.0
        %v1640 = vmul.f32 %v1639, %v1623
        %v1641 = vand.u32 2147483647, %v1623
        %vm1642 = vcmp.lt.f32.partialorder %v1641, 0.0004427343
        %v1643 = vsel %vm1642, %v1640, %v1637
        %v1644 = vadd.f32 %v1625, 1.0
        %v1645 = vlog2.pop %v1644
        %v1646 = vmul.f32 %v1645, 0.6931472
        %v1647 = vmul.f32 -0.5, %v1625
        %v1648 = vadd.f32 %v1647, 1.0
        %v1649 = vmul.f32 %v1648, %v1625
        %v1650 = vand.u32 2147483647, %v1625
        %vm1651 = vcmp.lt.f32.partialorder %v1650, 0.0004427343
        %v1652 = vsel %vm1651, %v1649, %v1646
        %v1653 = vsel %vm1614, %v1601, %v1634
        %v1654 = vsel %vm1615, %v1606, %v1643
        %v1655 = vsel %vm1616, %v1611, %v1652
        %v1656 = vxor.u32 %v1601, 2147483648
        %v1657 = vxor.u32 %v1606, 2147483648
        %v1658 = vxor.u32 %v1611, 2147483648
        %v1659 = vmul.f32 %v1656, 1.442695
        %v1660 = vpow.pop %v1659
        %v1661 = vmul.f32 %v1657, 1.442695
        %v1662 = vpow.pop %v1661
        %v1663 = vmul.f32 %v1658, 1.442695
        %v1664 = vpow.pop %v1663
        %v1665 = vadd.f32 %v1660, 1.0
        %v1666 = vadd.f32 %v1662, 1.0
        %v1667 = vadd.f32 %v1664, 1.0
        %v1668 = vrcp.pop %v1665
        %v1669 = vmul.f32 1.0, %v1668
        %v1670 = vrcp.pop %v1666
        %v1671 = vmul.f32 1.0, %v1670
        %v1672 = vrcp.pop %v1667
        %v1673 = vmul.f32 1.0, %v1672
        %v1674 = vtanh.pop %v1601
        %v1675 = vtanh.pop %v1606
        %v1676 = vtanh.pop %v1611
        %v1677 = vlaneseq
        %v1678 = vshrl.u32 %v1677, 7
        %v1679 = vadd.s32 %v1678, 8
        %v1680 = vadd.s32 %v1678, 16
        %vm1681 = vcmp.lt.s32.totalorder %v1678, 16
        %vm1682 = vcmp.lt.s32.totalorder %v1679, 16
        %vm1683 = vcmp.lt.s32.totalorder %v1680, 16
        %vm1684 = vcmp.eq.s32.totalorder %v1678, 16
        %vm1685 = vcmp.eq.s32.totalorder %v1679, 16
        %vm1686 = vcmp.eq.s32.totalorder %v1680, 16
        %v1687 = vsel %vm1684, %v1669, %v1674
        %v1688 = vsel %vm1685, %v1671, %v1675
        %v1689 = vsel %vm1686, %v1673, %v1676
        %v1690 = vsel %vm1681, %v1653, %v1687
        %v1691 = vsel %vm1682, %v1654, %v1688
        %v1692 = vsel %vm1683, %v1655, %v1689
        %1693 = vst.msk [vmem:[%s263] sm:$0xff] %vm660, %v1690
        %1694 = vst.msk [vmem:[%s263 + $0x8] sm:$0xff] %vm660, %v1691
        %vm1695 = vcmask 386048
        %1696 = vst.msk [vmem:[%s263 + $0x10] sm:$0x3] %vm1695, %v1692
        %p1697 = scmp.lt.s32.totalorder %s18, 1
        %s1698 = scalar_select %p1697, %s18, 1
        %s1699 = smul.addr %s1698, 3
        %s1700 = smul.addr %s1699, 8
        %s1701 = scalar_lea.vmem %s6, %s1700
        // Predicated region
        $region49: #{tpu_custom_call.1} parent=43 // pred_check
          %p1702 = pneg %p167
        $region50: #{tpu_custom_call.1} parent=43 // pred_check_branch
          %1704 = sbr.rel (%p1702) target = $region52
        $region51: #{tpu_custom_call.1} parent=43 // pred_region
          _
        $region52: #{tpu_custom_call.1} parent=43 // pred_fallthru
          _
      $region44: #{tpu_custom_call.1} parent=5 // pred_fallthru
        _
      %p1705 = scmp.le.s32.totalorder 2, %s13
      // Predicated region
      $region53: #{tpu_custom_call.1} parent=5 // pred_check
        %p1706 = pneg %p1705
      $region54: #{tpu_custom_call.1} parent=5 // pred_check_branch
        %1708 = sbr.rel (%p1706) target = $region56
      $region55: #{tpu_custom_call.1} parent=5 // pred_region
        %s1709 = ssub.s32 %s13, 2
        // Predicated region
        $region57: #{tpu_custom_call.1} parent=55 // pred_check
          %p1710 = pneg %p173
        $region58: #{tpu_custom_call.1} parent=55 // pred_check_branch
          %1712 = sbr.rel (%p1710) target = $region60
        $region59: #{tpu_custom_call.1} parent=55 // pred_region
          %p1713 = scmp.lt.s32.totalorder %s19, 1
          %s1714 = scalar_select %p1713, %s19, 1
          %s1715 = smul.addr %s1714, 3
          %s1716 = smul.addr %s1715, 8
          %s1717 = scalar_lea.vmem %s6, %s1716
        $region60: #{tpu_custom_call.1} parent=55 // pred_fallthru
          _
      $region56: #{tpu_custom_call.1} parent=5 // pred_fallthru
        _
    $region6: #{tpu_custom_call.1} parent=1 // loop_footer
      %s17 = sadd.s32 1, %s13
    $region7: #{tpu_custom_call.1} parent=1 // loop_footer_branch
      %12 = sbr.rel target = $region3
    $region8: #{tpu_custom_call.1} parent=1 // loop_exit
      _
    %1718 = vsyncpa [#allocation3], 1
    %s1719 = scalar_lea.sflag [#allocation3], 1
    %1720 = vsyncpa %s1719, 1

</llo_original>
